<compile_context>
chip_gen: v7x
topology: tpu7x:2x2x1
jax: 0.10.0
libtpu: 0.0.40
codegen_flags: <defaults>
</compile_context>

<pallas_src>
import functools

import jax
import jax.numpy as jnp
from jax.experimental import pallas as pl
from jax.experimental.pallas import tpu as pltpu


# ----------------------------------------------------------------------------
# Kernel
# ----------------------------------------------------------------------------
def lstm_chunk_kernel(x_ref, wx_ref, wh_ref, b_ref, wo_ref, bo_ref,
                      out_ref, h_ref, c_ref):
    """One (batch-shard, time-chunk) grid step of the LSTM recurrence.

    x_ref  : (T_chunk, B_shard, I)   f32, time-major input chunk
    wx_ref : (I, 4*H_pad)            bf16, gates stacked [f, i, o, c], lane-padded
    wh_ref : (H_pad, 4*H_pad)        bf16
    b_ref  : (1, 4*H_pad)            f32 gate bias (padded lanes are 0)
    wo_ref : (H_pad, O_pad)          bf16 output head
    bo_ref : (1, O_pad)              f32
    out_ref: (B_shard, O_pad)        f32 logits (written on the last chunk)
    h_ref, c_ref: (B_shard, H_pad)   f32 VMEM scratch carried across chunks
    """
    tc, bs, i_dim = x_ref.shape
    h_pad = h_ref.shape[1]
    t_blk = pl.program_id(1)

    # Reset the carried state at the first time-chunk of this batch shard.
    @pl.when(t_blk == 0)
    def _():
        h_ref[...] = jnp.zeros_like(h_ref)
        c_ref[...] = jnp.zeros_like(c_ref)

    # Chunked, hoisted input projection: ONE MXU matmul for the whole chunk,
    # bias folded in.  Reshape while still f32 (sublane-tile aligned), then
    # cast to bf16 only for the MXU operands; accumulate in f32.
    x_blk = x_ref[...].reshape(tc * bs, i_dim).astype(jnp.bfloat16)
    z_all = (jnp.dot(x_blk, wx_ref[...], preferred_element_type=jnp.float32)
             + b_ref[...])                              # (tc*bs, 4*H_pad) f32
    z_all = z_all.reshape(tc, bs, 4 * h_pad)            # leading-axis per-step index

    wh = wh_ref[...]                                    # resident bf16 (H_pad, 4*H_pad)
    h = h_ref[...]
    c = c_ref[...]

    # Recurrence, statically unrolled only within the chunk (chunk size bounds
    # code size / vreg live ranges; the grid provides the outer loop).
    for t in range(tc):
        z = z_all[t] + jnp.dot(h.astype(jnp.bfloat16), wh,
                               preferred_element_type=jnp.float32)   # (bs, 4*H_pad)

        # Fused nonlinearities: one sigmoid over the contiguous [f|i|o] slab,
        # one tanh over c_hat.  All slices are 128-lane aligned.
        gates = jax.nn.sigmoid(z[:, :3 * h_pad])
        c_hat = jnp.tanh(z[:, 3 * h_pad:])

        f_t = gates[:, 0 * h_pad:1 * h_pad]
        i_t = gates[:, 1 * h_pad:2 * h_pad]
        o_t = gates[:, 2 * h_pad:3 * h_pad]

        c = f_t * c + i_t * c_hat
        h = o_t * jnp.tanh(c)

    h_ref[...] = h
    c_ref[...] = c

    # Output head fused into the epilogue of the last time-chunk; lane-dense
    # (O padded to a multiple of 128) so the store is an unmasked vst.
    @pl.when(t_blk == pl.num_programs(1) - 1)
    def _():
        out_ref[...] = (jnp.dot(h.astype(jnp.bfloat16), wo_ref[...],
                                preferred_element_type=jnp.float32)
                        + bo_ref[...])


# ----------------------------------------------------------------------------
# Wrapper: padding, layout, pallas_call
# ----------------------------------------------------------------------------
def _round_up(n, m):
    return ((n + m - 1) // m) * m


def _largest_divisor_leq(n, cap):
    for c in range(min(n, cap), 0, -1):
        if n % c == 0:
            return c
    return 1


def _pad_gates(w, h, h_pad):
    """(rows, 4*H) -> (rows, 4*H_pad); each gate block lane-aligned, pad lanes 0."""
    rows = w.shape[0]
    out = jnp.zeros((rows, 4 * h_pad), w.dtype)
    for g in range(4):
        out = out.at[:, g * h_pad:g * h_pad + h].set(w[:, g * h:(g + 1) * h])
    return out


def _pad_rows(w, rows_pad):
    return jnp.zeros((rows_pad, w.shape[1]), w.dtype).at[:w.shape[0]].set(w)


@functools.partial(jax.jit, static_argnames=("t_chunk",))
def custom_lstm_classifier_forward(x, params, *, t_chunk=4):
    """x: (B, T, I) float32 -> logits (B, O) float32."""
    B, T, I = x.shape
    H = params["Wh_all"].shape[0]
    O = params["Wout"].shape[1]

    B_SHARD = 8                                   # one sublane tile per shard
    B_pad = _round_up(B, B_SHARD)
    H_pad = _round_up(H, 128)                     # lane-aligned gate blocks
    O_pad = _round_up(O, 128)                     # lane-dense output store
    tc = _largest_divisor_leq(T, t_chunk)
    num_b = B_pad // B_SHARD
    num_t = T // tc

    # Time-major 3D input, batch padded to a full sublane tile.  Kept f32 in
    # HBM (f32 (8,128) tiling rules for the streamed BlockSpec); cast to bf16
    # in-kernel right before the MXU.
    x_p = jnp.zeros((T, B_pad, I), jnp.float32).at[:, :B, :].set(
        jnp.transpose(x, (1, 0, 2)))

    # Gate-aligned, lane-padded weights.  MXU operands in bf16; biases f32.
    wx_p = _pad_gates(params["Wx_all"], H, H_pad).astype(jnp.bfloat16)           # (I, 4*H_pad)
    wh_p = _pad_rows(_pad_gates(params["Wh_all"], H, H_pad),
                     H_pad).astype(jnp.bfloat16)                                 # (H_pad, 4*H_pad)
    b_p = _pad_gates(params["b_all"], H, H_pad)                                  # (1, 4*H_pad) f32
    wo_p = _pad_rows(
        jnp.zeros((H, O_pad), jnp.float32).at[:, :O].set(params["Wout"]),
        H_pad).astype(jnp.bfloat16)                                              # (H_pad, O_pad)
    bo_p = jnp.zeros((1, O_pad), jnp.float32).at[:, :O].set(params["bout"])      # (1, O_pad)

    out_p = pl.pallas_call(
        lstm_chunk_kernel,
        out_shape=jax.ShapeDtypeStruct((B_pad, O_pad), jnp.float32),
        grid_spec=pltpu.PrefetchScalarGridSpec(
            num_scalar_prefetch=0,
            grid=(num_b, num_t),                  # (parallel batch shards, serial time chunks)
            in_specs=[
                pl.BlockSpec((tc, B_SHARD, I), lambda b, t: (t, b, 0)),   # streamed x chunk
                pl.BlockSpec((I, 4 * H_pad), lambda b, t: (0, 0)),        # resident Wx
                pl.BlockSpec((H_pad, 4 * H_pad), lambda b, t: (0, 0)),    # resident Wh
                pl.BlockSpec((1, 4 * H_pad), lambda b, t: (0, 0)),        # gate bias
                pl.BlockSpec((H_pad, O_pad), lambda b, t: (0, 0)),        # resident Wout
                pl.BlockSpec((1, O_pad), lambda b, t: (0, 0)),            # out bias
            ],
            out_specs=pl.BlockSpec((B_SHARD, O_pad), lambda b, t: (b, 0)),
            scratch_shapes=[
                pltpu.VMEM((B_SHARD, H_pad), jnp.float32),   # h carry
                pltpu.VMEM((B_SHARD, H_pad), jnp.float32),   # c carry
            ],
        ),
        compiler_params=pltpu.CompilerParams(
            dimension_semantics=("parallel", "arbitrary"),
            vmem_limit_bytes=32 * 1024 * 1024,    # tiny residency; safe on 64 MiB v7x too
        ),
    )(x_p, wx_p, wh_p, b_p, wo_p, bo_p)

    return out_p[:B, :O]


# ----------------------------------------------------------------------------
# Params / reference (PyTorch CustomLSTMClassifier semantics)
# ----------------------------------------------------------------------------
def init_params(key, input_size, hidden_size, output_size):
    """Deterministic init mimicking nn.Linear default (uniform +/- 1/sqrt(fan_in))."""
    I, H, O = input_size, hidden_size, output_size
    keys = jax.random.split(key, 10)
    kg = 1.0 / jnp.sqrt(jnp.float32(I + H))   # fan_in of gate Linears
    ko = 1.0 / jnp.sqrt(jnp.float32(H))       # fan_in of output Linear

    def u(k, shape, bound):
        return jax.random.uniform(k, shape, jnp.float32, -bound, bound)

    # PyTorch Linear weights are (out, in) = (H, I+H); gate order [f, i, o, c].
    W_gates = [u(keys[g], (H, I + H), kg) for g in range(4)]
    b_gates = [u(keys[4 + g], (H,), kg) for g in range(4)]

    Wx_all = jnp.concatenate([W[:, :I].T for W in W_gates], axis=1)   # (I, 4H)
    Wh_all = jnp.concatenate([W[:, I:].T for W in W_gates], axis=1)   # (H, 4H)
    b_all = jnp.concatenate(b_gates, axis=0).reshape(1, 4 * H)        # (1, 4H)

    Wout = u(keys[8], (O, H), ko).T                                   # (H, O)
    bout = u(keys[9], (O,), ko).reshape(1, O)                         # (1, O)

    return {"Wx_all": Wx_all, "Wh_all": Wh_all, "b_all": b_all,
            "Wout": Wout, "bout": bout}


def reference_forward(x, params):
    """Pure-JAX f32 reference matching the PyTorch forward semantics."""
    B, T, I = x.shape
    H = params["Wh_all"].shape[0]
    h = jnp.zeros((B, H), jnp.float32)
    c = jnp.zeros((B, H), jnp.float32)
    for t in range(T):
        x_t = x[:, t, :]
        z = x_t @ params["Wx_all"] + h @ params["Wh_all"] + params["b_all"]
        f = jax.nn.sigmoid(z[:, 0 * H:1 * H])
        i = jax.nn.sigmoid(z[:, 1 * H:2 * H])
        o = jax.nn.sigmoid(z[:, 2 * H:3 * H])
        chat = jnp.tanh(z[:, 3 * H:4 * H])
        c = f * c + i * chat
        h = o * jnp.tanh(c)
    return h @ params["Wout"] + params["bout"]


if __name__ == "__main__":
    batch, seq_len = 2, 8
    input_size, hidden_size, output_size = 16, 32, 4

    key = jax.random.PRNGKey(0)
    k_x, k_p = jax.random.split(key)
    x = jax.random.normal(k_x, (batch, seq_len, input_size), jnp.float32)
    params = init_params(k_p, input_size, hidden_size, output_size)

    logits = custom_lstm_classifier_forward(x, params, t_chunk=4)
    logits = jax.block_until_ready(logits)

    ref = reference_forward(x, params)
    assert logits.shape == (batch, output_size)
    max_err = float(jnp.max(jnp.abs(logits - ref)))
    # bf16 MXU operands (f32 accumulation / f32 state) vs. pure-f32 reference:
    # tolerance loosened accordingly.
    assert jnp.allclose(logits, ref, atol=8e-2, rtol=8e-2), (
        f"mismatch vs reference, max abs err {max_err}")

    print("KERNEL_OK")
</pallas_src>

<mosaic_0001>
module attributes {stable_mosaic.version = 11 : i64} {
  func.func @lstm_chunk_kernel(%arg0: i32, %arg1: i32, %arg2: memref<4x8x16xf32, #tpu.memory_space<vmem>>, %arg3: memref<16x512xbf16, #tpu.memory_space<vmem>>, %arg4: memref<128x512xbf16, #tpu.memory_space<vmem>>, %arg5: memref<1x512xf32, #tpu.memory_space<vmem>>, %arg6: memref<128x128xbf16, #tpu.memory_space<vmem>>, %arg7: memref<1x128xf32, #tpu.memory_space<vmem>>, %arg8: memref<8x128xf32, #tpu.memory_space<vmem>>, %arg9: memref<8x128xf32, #tpu.memory_space<vmem>>, %arg10: memref<8x128xf32, #tpu.memory_space<vmem>>) attributes {dimension_semantics = [#tpu.dimension_semantics<parallel>, #tpu.dimension_semantics<arbitrary>], iteration_bounds = array<i64: 1, 2>, scalar_prefetch = 0 : i64, scratch_operands = 2 : i64, tpu.core_type = #tpu.core_type<tc>, window_params = [{transform_indices = @transform_0, window_bounds = array<i64: 4, 8, 16>}, {pipeline_mode = #tpu.pipeline_mode<synchronous>, transform_indices = @transform_1, window_bounds = array<i64: 16, 512>}, {pipeline_mode = #tpu.pipeline_mode<synchronous>, transform_indices = @transform_2, window_bounds = array<i64: 128, 512>}, {pipeline_mode = #tpu.pipeline_mode<synchronous>, transform_indices = @transform_3, window_bounds = array<i64: 1, 512>}, {pipeline_mode = #tpu.pipeline_mode<synchronous>, transform_indices = @transform_4, window_bounds = array<i64: 128, 128>}, {pipeline_mode = #tpu.pipeline_mode<synchronous>, transform_indices = @transform_5, window_bounds = array<i64: 1, 128>}, {transform_indices = @transform_6, window_bounds = array<i64: 8, 128>}]} {
    %c0_i32 = arith.constant 0 : i32
    %0 = arith.cmpi eq, %arg1, %c0_i32 : i32
    %1 = arith.extui %0 : i1 to i32
    %c0_i32_0 = arith.constant 0 : i32
    %2 = arith.cmpi ne, %1, %c0_i32_0 : i32
    scf.if %2 {
      %cst_26 = arith.constant 0.000000e+00 : f32
      %104 = vector.broadcast %cst_26 : f32 to vector<8x128xf32>
      %c0_27 = arith.constant 0 : index
      %c0_28 = arith.constant 0 : index
      %105 = vector.load %arg9[%c0_27, %c0_28] : memref<8x128xf32, #tpu.memory_space<vmem>>, vector<8x128xf32>
      tpu.vector_store %arg9[%c0_27, %c0_28], %104 {strides = array<i32>} : memref<8x128xf32, #tpu.memory_space<vmem>>, vector<8x128xf32>,
      %cst_29 = arith.constant 0.000000e+00 : f32
      %106 = vector.broadcast %cst_29 : f32 to vector<8x128xf32>
      %c0_30 = arith.constant 0 : index
      %c0_31 = arith.constant 0 : index
      %107 = vector.load %arg10[%c0_30, %c0_31] : memref<8x128xf32, #tpu.memory_space<vmem>>, vector<8x128xf32>
      tpu.vector_store %arg10[%c0_30, %c0_31], %106 {strides = array<i32>} : memref<8x128xf32, #tpu.memory_space<vmem>>, vector<8x128xf32>,
    } else {
    }
    %c0 = arith.constant 0 : index
    %c0_1 = arith.constant 0 : index
    %c0_2 = arith.constant 0 : index
    %3 = vector.load %arg2[%c0, %c0_1, %c0_2] : memref<4x8x16xf32, #tpu.memory_space<vmem>>, vector<4x8x16xf32>
    %4 = vector.shape_cast %3 : vector<4x8x16xf32> to vector<32x16xf32>
    %5 = arith.truncf %4 : vector<32x16xf32> to vector<32x16xbf16>
    %c0_3 = arith.constant 0 : index
    %c0_4 = arith.constant 0 : index
    %6 = vector.load %arg3[%c0_3, %c0_4] : memref<16x512xbf16, #tpu.memory_space<vmem>>, vector<16x512xbf16>
    %cst = arith.constant dense<0.000000e+00> : vector<32x512xf32>
    %7 = tpu.matmul %5, %6, %cst {dimension_numbers = #tpu.dot_dimension_numbers<[1], [0], [0], [1], [0, 0, 1, 1], [], []>} : vector<32x16xbf16>, vector<16x512xbf16>, vector<32x512xf32> -> vector<32x512xf32>
    %c0_5 = arith.constant 0 : index
    %c0_6 = arith.constant 0 : index
    %8 = vector.load %arg5[%c0_5, %c0_6] : memref<1x512xf32, #tpu.memory_space<vmem>>, vector<1x512xf32>
    %9 = vector.broadcast %8 : vector<1x512xf32> to vector<32x512xf32>
    %10 = arith.addf %7, %9 : vector<32x512xf32>
    %11 = vector.shape_cast %10 : vector<32x512xf32> to vector<4x8x512xf32>
    %c0_7 = arith.constant 0 : index
    %c0_8 = arith.constant 0 : index
    %12 = vector.load %arg4[%c0_7, %c0_8] : memref<128x512xbf16, #tpu.memory_space<vmem>>, vector<128x512xbf16>
    %c0_9 = arith.constant 0 : index
    %c0_10 = arith.constant 0 : index
    %13 = vector.load %arg9[%c0_9, %c0_10] : memref<8x128xf32, #tpu.memory_space<vmem>>, vector<8x128xf32>
    %c0_11 = arith.constant 0 : index
    %c0_12 = arith.constant 0 : index
    %14 = vector.load %arg10[%c0_11, %c0_12] : memref<8x128xf32, #tpu.memory_space<vmem>>, vector<8x128xf32>
    %15 = vector.extract_strided_slice %11 {offsets = [0, 0, 0], sizes = [1, 8, 512], strides = [1, 1, 1]} : vector<4x8x512xf32> to vector<1x8x512xf32>
    %16 = vector.shape_cast %15 : vector<1x8x512xf32> to vector<8x512xf32>
    %17 = arith.truncf %13 : vector<8x128xf32> to vector<8x128xbf16>
    %cst_13 = arith.constant dense<0.000000e+00> : vector<8x512xf32>
    %18 = tpu.matmul %17, %12, %cst_13 {dimension_numbers = #tpu.dot_dimension_numbers<[1], [0], [0], [1], [0, 0, 1, 1], [], []>} : vector<8x128xbf16>, vector<128x512xbf16>, vector<8x512xf32> -> vector<8x512xf32>
    %19 = arith.addf %16, %18 : vector<8x512xf32>
    %20 = vector.extract_strided_slice %19 {offsets = [0, 0], sizes = [8, 384], strides = [1, 1]} : vector<8x512xf32> to vector<8x384xf32>
    %21 = arith.negf %20 : vector<8x384xf32>
    %22 = math.exp %21 : vector<8x384xf32>
    %cst_14 = arith.constant 1.000000e+00 : f32
    %23 = vector.broadcast %cst_14 : f32 to vector<8x384xf32>
    %24 = arith.addf %23, %22 : vector<8x384xf32>
    %25 = arith.divf %23, %24 : vector<8x384xf32>
    %26 = vector.extract_strided_slice %19 {offsets = [0, 384], sizes = [8, 128], strides = [1, 1]} : vector<8x512xf32> to vector<8x128xf32>
    %27 = math.tanh %26 : vector<8x128xf32>
    %28 = vector.extract_strided_slice %25 {offsets = [0, 0], sizes = [8, 128], strides = [1, 1]} : vector<8x384xf32> to vector<8x128xf32>
    %29 = vector.extract_strided_slice %25 {offsets = [0, 128], sizes = [8, 128], strides = [1, 1]} : vector<8x384xf32> to vector<8x128xf32>
    %30 = vector.extract_strided_slice %25 {offsets = [0, 256], sizes = [8, 128], strides = [1, 1]} : vector<8x384xf32> to vector<8x128xf32>
    %31 = arith.mulf %28, %14 : vector<8x128xf32>
    %32 = arith.mulf %29, %27 : vector<8x128xf32>
    %33 = arith.addf %31, %32 : vector<8x128xf32>
    %34 = math.tanh %33 : vector<8x128xf32>
    %35 = arith.mulf %30, %34 : vector<8x128xf32>
    %36 = vector.extract_strided_slice %11 {offsets = [1, 0, 0], sizes = [1, 8, 512], strides = [1, 1, 1]} : vector<4x8x512xf32> to vector<1x8x512xf32>
    %37 = vector.shape_cast %36 : vector<1x8x512xf32> to vector<8x512xf32>
    %38 = arith.truncf %35 : vector<8x128xf32> to vector<8x128xbf16>
    %cst_15 = arith.constant dense<0.000000e+00> : vector<8x512xf32>
    %39 = tpu.matmul %38, %12, %cst_15 {dimension_numbers = #tpu.dot_dimension_numbers<[1], [0], [0], [1], [0, 0, 1, 1], [], []>} : vector<8x128xbf16>, vector<128x512xbf16>, vector<8x512xf32> -> vector<8x512xf32>
    %40 = arith.addf %37, %39 : vector<8x512xf32>
    %41 = vector.extract_strided_slice %40 {offsets = [0, 0], sizes = [8, 384], strides = [1, 1]} : vector<8x512xf32> to vector<8x384xf32>
    %42 = arith.negf %41 : vector<8x384xf32>
    %43 = math.exp %42 : vector<8x384xf32>
    %cst_16 = arith.constant 1.000000e+00 : f32
    %44 = vector.broadcast %cst_16 : f32 to vector<8x384xf32>
    %45 = arith.addf %44, %43 : vector<8x384xf32>
    %46 = arith.divf %44, %45 : vector<8x384xf32>
    %47 = vector.extract_strided_slice %40 {offsets = [0, 384], sizes = [8, 128], strides = [1, 1]} : vector<8x512xf32> to vector<8x128xf32>
    %48 = math.tanh %47 : vector<8x128xf32>
    %49 = vector.extract_strided_slice %46 {offsets = [0, 0], sizes = [8, 128], strides = [1, 1]} : vector<8x384xf32> to vector<8x128xf32>
    %50 = vector.extract_strided_slice %46 {offsets = [0, 128], sizes = [8, 128], strides = [1, 1]} : vector<8x384xf32> to vector<8x128xf32>
    %51 = vector.extract_strided_slice %46 {offsets = [0, 256], sizes = [8, 128], strides = [1, 1]} : vector<8x384xf32> to vector<8x128xf32>
    %52 = arith.mulf %49, %33 : vector<8x128xf32>
    %53 = arith.mulf %50, %48 : vector<8x128xf32>
    %54 = arith.addf %52, %53 : vector<8x128xf32>
    %55 = math.tanh %54 : vector<8x128xf32>
    %56 = arith.mulf %51, %55 : vector<8x128xf32>
    %57 = vector.extract_strided_slice %11 {offsets = [2, 0, 0], sizes = [1, 8, 512], strides = [1, 1, 1]} : vector<4x8x512xf32> to vector<1x8x512xf32>
    %58 = vector.shape_cast %57 : vector<1x8x512xf32> to vector<8x512xf32>
    %59 = arith.truncf %56 : vector<8x128xf32> to vector<8x128xbf16>
    %cst_17 = arith.constant dense<0.000000e+00> : vector<8x512xf32>
    %60 = tpu.matmul %59, %12, %cst_17 {dimension_numbers = #tpu.dot_dimension_numbers<[1], [0], [0], [1], [0, 0, 1, 1], [], []>} : vector<8x128xbf16>, vector<128x512xbf16>, vector<8x512xf32> -> vector<8x512xf32>
    %61 = arith.addf %58, %60 : vector<8x512xf32>
    %62 = vector.extract_strided_slice %61 {offsets = [0, 0], sizes = [8, 384], strides = [1, 1]} : vector<8x512xf32> to vector<8x384xf32>
    %63 = arith.negf %62 : vector<8x384xf32>
    %64 = math.exp %63 : vector<8x384xf32>
    %cst_18 = arith.constant 1.000000e+00 : f32
    %65 = vector.broadcast %cst_18 : f32 to vector<8x384xf32>
    %66 = arith.addf %65, %64 : vector<8x384xf32>
    %67 = arith.divf %65, %66 : vector<8x384xf32>
    %68 = vector.extract_strided_slice %61 {offsets = [0, 384], sizes = [8, 128], strides = [1, 1]} : vector<8x512xf32> to vector<8x128xf32>
    %69 = math.tanh %68 : vector<8x128xf32>
    %70 = vector.extract_strided_slice %67 {offsets = [0, 0], sizes = [8, 128], strides = [1, 1]} : vector<8x384xf32> to vector<8x128xf32>
    %71 = vector.extract_strided_slice %67 {offsets = [0, 128], sizes = [8, 128], strides = [1, 1]} : vector<8x384xf32> to vector<8x128xf32>
    %72 = vector.extract_strided_slice %67 {offsets = [0, 256], sizes = [8, 128], strides = [1, 1]} : vector<8x384xf32> to vector<8x128xf32>
    %73 = arith.mulf %70, %54 : vector<8x128xf32>
    %74 = arith.mulf %71, %69 : vector<8x128xf32>
    %75 = arith.addf %73, %74 : vector<8x128xf32>
    %76 = math.tanh %75 : vector<8x128xf32>
    %77 = arith.mulf %72, %76 : vector<8x128xf32>
    %78 = vector.extract_strided_slice %11 {offsets = [3, 0, 0], sizes = [1, 8, 512], strides = [1, 1, 1]} : vector<4x8x512xf32> to vector<1x8x512xf32>
    %79 = vector.shape_cast %78 : vector<1x8x512xf32> to vector<8x512xf32>
    %80 = arith.truncf %77 : vector<8x128xf32> to vector<8x128xbf16>
    %cst_19 = arith.constant dense<0.000000e+00> : vector<8x512xf32>
    %81 = tpu.matmul %80, %12, %cst_19 {dimension_numbers = #tpu.dot_dimension_numbers<[1], [0], [0], [1], [0, 0, 1, 1], [], []>} : vector<8x128xbf16>, vector<128x512xbf16>, vector<8x512xf32> -> vector<8x512xf32>
    %82 = arith.addf %79, %81 : vector<8x512xf32>
    %83 = vector.extract_strided_slice %82 {offsets = [0, 0], sizes = [8, 384], strides = [1, 1]} : vector<8x512xf32> to vector<8x384xf32>
    %84 = arith.negf %83 : vector<8x384xf32>
    %85 = math.exp %84 : vector<8x384xf32>
    %cst_20 = arith.constant 1.000000e+00 : f32
    %86 = vector.broadcast %cst_20 : f32 to vector<8x384xf32>
    %87 = arith.addf %86, %85 : vector<8x384xf32>
    %88 = arith.divf %86, %87 : vector<8x384xf32>
    %89 = vector.extract_strided_slice %82 {offsets = [0, 384], sizes = [8, 128], strides = [1, 1]} : vector<8x512xf32> to vector<8x128xf32>
    %90 = math.tanh %89 : vector<8x128xf32>
    %91 = vector.extract_strided_slice %88 {offsets = [0, 0], sizes = [8, 128], strides = [1, 1]} : vector<8x384xf32> to vector<8x128xf32>
    %92 = vector.extract_strided_slice %88 {offsets = [0, 128], sizes = [8, 128], strides = [1, 1]} : vector<8x384xf32> to vector<8x128xf32>
    %93 = vector.extract_strided_slice %88 {offsets = [0, 256], sizes = [8, 128], strides = [1, 1]} : vector<8x384xf32> to vector<8x128xf32>
    %94 = arith.mulf %91, %75 : vector<8x128xf32>
    %95 = arith.mulf %92, %90 : vector<8x128xf32>
    %96 = arith.addf %94, %95 : vector<8x128xf32>
    %97 = math.tanh %96 : vector<8x128xf32>
    %98 = arith.mulf %93, %97 : vector<8x128xf32>
    %c0_21 = arith.constant 0 : index
    %c0_22 = arith.constant 0 : index
    %99 = vector.load %arg9[%c0_21, %c0_22] : memref<8x128xf32, #tpu.memory_space<vmem>>, vector<8x128xf32>
    tpu.vector_store %arg9[%c0_21, %c0_22], %98 {strides = array<i32>} : memref<8x128xf32, #tpu.memory_space<vmem>>, vector<8x128xf32>,
    %c0_23 = arith.constant 0 : index
    %c0_24 = arith.constant 0 : index
    %100 = vector.load %arg10[%c0_23, %c0_24] : memref<8x128xf32, #tpu.memory_space<vmem>>, vector<8x128xf32>
    tpu.vector_store %arg10[%c0_23, %c0_24], %96 {strides = array<i32>} : memref<8x128xf32, #tpu.memory_space<vmem>>, vector<8x128xf32>,
    %c1_i32 = arith.constant 1 : i32
    %101 = arith.cmpi eq, %arg1, %c1_i32 : i32
    %102 = arith.extui %101 : i1 to i32
    %c0_i32_25 = arith.constant 0 : i32
    %103 = arith.cmpi ne, %102, %c0_i32_25 : i32
    scf.if %103 {
      %104 = arith.truncf %98 : vector<8x128xf32> to vector<8x128xbf16>
      %c0_26 = arith.constant 0 : index
      %c0_27 = arith.constant 0 : index
      %105 = vector.load %arg6[%c0_26, %c0_27] : memref<128x128xbf16, #tpu.memory_space<vmem>>, vector<128x128xbf16>
      %cst_28 = arith.constant dense<0.000000e+00> : vector<8x128xf32>
      %106 = tpu.matmul %104, %105, %cst_28 {dimension_numbers = #tpu.dot_dimension_numbers<[1], [0], [0], [1], [0, 0, 1, 1], [], []>} : vector<8x128xbf16>, vector<128x128xbf16>, vector<8x128xf32> -> vector<8x128xf32>
      %c0_29 = arith.constant 0 : index
      %c0_30 = arith.constant 0 : index
      %107 = vector.load %arg7[%c0_29, %c0_30] : memref<1x128xf32, #tpu.memory_space<vmem>>, vector<1x128xf32>
      %108 = vector.broadcast %107 : vector<1x128xf32> to vector<8x128xf32>
      %109 = arith.addf %106, %108 : vector<8x128xf32>
      %c0_31 = arith.constant 0 : index
      %c0_32 = arith.constant 0 : index
      %110 = vector.load %arg8[%c0_31, %c0_32] : memref<8x128xf32, #tpu.memory_space<vmem>>, vector<8x128xf32>
      tpu.vector_store %arg8[%c0_31, %c0_32], %109 {strides = array<i32>} : memref<8x128xf32, #tpu.memory_space<vmem>>, vector<8x128xf32>,
    } else {
    }
    return
  }
  func.func @transform_0(%arg0: i32, %arg1: i32) -> (i32, i32, i32) {
    %c0_i32 = arith.constant 0 : i32
    %c0_i32_0 = arith.constant 0 : i32
    return %arg1, %arg0, %c0_i32 : i32, i32, i32
  }
  func.func @transform_1(%arg0: i32, %arg1: i32) -> (i32, i32) {
    %c0_i32 = arith.constant 0 : i32
    %c0_i32_0 = arith.constant 0 : i32
    %c0_i32_1 = arith.constant 0 : i32
    return %c0_i32, %c0_i32_0 : i32, i32
  }
  func.func @transform_2(%arg0: i32, %arg1: i32) -> (i32, i32) {
    %c0_i32 = arith.constant 0 : i32
    %c0_i32_0 = arith.constant 0 : i32
    %c0_i32_1 = arith.constant 0 : i32
    return %c0_i32, %c0_i32_0 : i32, i32
  }
  func.func @transform_3(%arg0: i32, %arg1: i32) -> (i32, i32) {
    %c0_i32 = arith.constant 0 : i32
    %c0_i32_0 = arith.constant 0 : i32
    %c0_i32_1 = arith.constant 0 : i32
    return %c0_i32, %c0_i32_0 : i32, i32
  }
  func.func @transform_4(%arg0: i32, %arg1: i32) -> (i32, i32) {
    %c0_i32 = arith.constant 0 : i32
    %c0_i32_0 = arith.constant 0 : i32
    %c0_i32_1 = arith.constant 0 : i32
    return %c0_i32, %c0_i32_0 : i32, i32
  }
  func.func @transform_5(%arg0: i32, %arg1: i32) -> (i32, i32) {
    %c0_i32 = arith.constant 0 : i32
    %c0_i32_0 = arith.constant 0 : i32
    %c0_i32_1 = arith.constant 0 : i32
    return %c0_i32, %c0_i32_0 : i32, i32
  }
  func.func @transform_6(%arg0: i32, %arg1: i32) -> (i32, i32) {
    %c0_i32 = arith.constant 0 : i32
    %c0_i32_0 = arith.constant 0 : i32
    return %arg0, %c0_i32 : i32, i32
  }
}

</mosaic_0001>

<llo_original>
// kernel: custom_lstm_classifier_forward.1
$region0: #{custom_lstm_classifier_forward.1}
  #allocation0 [shape = 'u32[]', space=smem, size = 0x4, offset = 0x4, fixed_abs, tag = 'smem constant byte address 0x4 - core index']
  #allocation1 [shape = 'u32[144,128]{1,0:T(1,128)}', space=vmem, size = 0x12000, scoped, tag = 'internal scratch']
  #allocation2 [shape = 'f32[8,128]{1,0:T(8,128)}', space=vmem, size = 0x1000, scoped, tag = 'scratch operand']
  #allocation3 [shape = 'f32[8,128]{1,0:T(8,128)}', space=vmem, size = 0x1000, scoped, tag = 'scratch operand']
  %s0 = inlined_call_operand.vmem [shape: f32[8,8,16], index: 0, kind: input, shape index: {}]
  %s1 = inlined_call_operand.vmem [shape: bf16[16,512], index: 1, kind: input, shape index: {}]
  %s2 = inlined_call_operand.vmem [shape: bf16[128,512], index: 2, kind: input, shape index: {}]
  %s3 = inlined_call_operand.vmem [shape: f32[1,512], index: 3, kind: input, shape index: {}]
  %s4 = inlined_call_operand.vmem [shape: bf16[128,128], index: 4, kind: input, shape index: {}]
  %s5 = inlined_call_operand.vmem [shape: f32[1,128], index: 5, kind: input, shape index: {}]
  %s6 = inlined_call_operand.vmem [shape: f32[8,128], index: 6, kind: output, shape index: {}]
  %s7 = sld [smem:[#allocation0]]
  $region65: #{custom_lstm_classifier_forward.1} parent=0
    _
  %s9 = ssub.s32 1, %s7
  %s10 = scalar_select 0, %s9, %s7
  loop: start=0, step=1, limit=4
  $region2: #{custom_lstm_classifier_forward.1} parent=0 // loop_pre_header
    _
  $region3: #{custom_lstm_classifier_forward.1} parent=0 // loop_header
    %s12 = sphi 0, %s16
    %p13 = scmp.ge.s32.totalorder %s12, 4
    %s19 = sphi 0, %s31
    %s20 = sphi 0, %s27
    %s21 = sphi 0, %s19
    %s22 = sphi 0, %s20
    %s23 = sphi 0, %s21
    %s24 = sphi 0, %s22
    %s36 = sphi 0, %s38
    %s39 = sphi 0, %s36
    %s40 = sphi 0, %s39
    %s56 = sphi 0, %s40
    %s60 = sphi 0, %s60
    %s62 = sphi 0, %s60
    %s63 = sphi 0, %s62
    %s77 = sphi 0, %s63
    %s81 = sphi 0, %s81
    %s83 = sphi 0, %s81
    %s84 = sphi 0, %s83
    %s98 = sphi 0, %s84
    %s102 = sphi 0, %s102
    %s104 = sphi 0, %s102
    %s105 = sphi 0, %s104
    %s119 = sphi 0, %s105
    %s123 = sphi 0, %s123
    %s125 = sphi 0, %s123
    %s126 = sphi 0, %s125
    %s140 = sphi 0, %s126
    %s144 = sphi 0, %s144
    %s146 = sphi 0, %s144
    %s147 = sphi 0, %s146
    %s161 = sphi 0, %s147
    %s167 = sphi 0, %s169
    %s170 = sphi 0, %s167
    %s171 = sphi 0, %s170
    %s187 = sphi 0, %s171
  $region4: #{custom_lstm_classifier_forward.1} parent=0 // loop_header_branch
    %15 = sbr.rel (%p13) target = $region8
  $region5: #{custom_lstm_classifier_forward.1} parent=0 // loop_body
    %s17 = ssub.s32 %s12, 1
    %s18 = ssub.s32 %s12, 2
    %s25 = sadd.s32 1, %s20
    %p26 = scmp.ge.s32.totalorder %s25, 2
    %s27 = scalar_select %p26, 0, %s25
    %s28 = sadd.s32 1, %s19
    %s29 = scalar_select %p26, %s28, %s19
    %p30 = scmp.ge.s32.totalorder %s29, 1
    %s31 = scalar_select %p30, 0, %s29
    %s32 = ssub.s32 %s20, %s27
    %s33 = ssub.s32 %s19, %s31
    %s34 = sor.u32 %s32, %s33
    %p35 = scmp.eq.s32.totalorder %s34, 0
    %s37 = sadd.s32 %s36, 1
    %s38 = scalar_select %p35, %s36, %s37
    %p41 = pneg %p35
    %p42 = scmp.eq.s32.totalorder %s12, 1
    %p43 = por %p41, %p42
    %p44 = scmp.ne.s32.totalorder %s36, %s39
    %p45 = scmp.eq.s32.totalorder %s12, 0
    %p46 = por %p44, %p45
    %p47 = scmp.ne.s32.totalorder %s36, %s39
    %p48 = scmp.eq.s32.totalorder %s17, 1
    %p49 = por %p47, %p48
    %p50 = scmp.ne.s32.totalorder %s39, %s40
    %p51 = scmp.eq.s32.totalorder %s17, 0
    %p52 = por %p50, %p51
    %p53 = scmp.ne.s32.totalorder %s39, %s40
    %p54 = scmp.eq.s32.totalorder %s18, 1
    %p55 = por %p53, %p54
    %p57 = scmp.ne.s32.totalorder %s40, %s56
    %p58 = scmp.eq.s32.totalorder %s18, 0
    %p59 = por %p57, %p58
    %s61 = sadd.s32 %s60, 1
    %p64 = scmp.eq.s32.totalorder %s12, 1
    %p65 = scmp.ne.s32.totalorder %s60, %s62
    %p66 = scmp.eq.s32.totalorder %s12, 0
    %p67 = por %p65, %p66
    %p68 = scmp.ne.s32.totalorder %s60, %s62
    %p69 = scmp.eq.s32.totalorder %s17, 1
    %p70 = por %p68, %p69
    %p71 = scmp.ne.s32.totalorder %s62, %s63
    %p72 = scmp.eq.s32.totalorder %s17, 0
    %p73 = por %p71, %p72
    %p74 = scmp.ne.s32.totalorder %s62, %s63
    %p75 = scmp.eq.s32.totalorder %s18, 1
    %p76 = por %p74, %p75
    %p78 = scmp.ne.s32.totalorder %s63, %s77
    %p79 = scmp.eq.s32.totalorder %s18, 0
    %p80 = por %p78, %p79
    %s82 = sadd.s32 %s81, 1
    %p85 = scmp.eq.s32.totalorder %s12, 1
    %p86 = scmp.ne.s32.totalorder %s81, %s83
    %p87 = scmp.eq.s32.totalorder %s12, 0
    %p88 = por %p86, %p87
    %p89 = scmp.ne.s32.totalorder %s81, %s83
    %p90 = scmp.eq.s32.totalorder %s17, 1
    %p91 = por %p89, %p90
    %p92 = scmp.ne.s32.totalorder %s83, %s84
    %p93 = scmp.eq.s32.totalorder %s17, 0
    %p94 = por %p92, %p93
    %p95 = scmp.ne.s32.totalorder %s83, %s84
    %p96 = scmp.eq.s32.totalorder %s18, 1
    %p97 = por %p95, %p96
    %p99 = scmp.ne.s32.totalorder %s84, %s98
    %p100 = scmp.eq.s32.totalorder %s18, 0
    %p101 = por %p99, %p100
    %s103 = sadd.s32 %s102, 1
    %p106 = scmp.eq.s32.totalorder %s12, 1
    %p107 = scmp.ne.s32.totalorder %s102, %s104
    %p108 = scmp.eq.s32.totalorder %s12, 0
    %p109 = por %p107, %p108
    %p110 = scmp.ne.s32.totalorder %s102, %s104
    %p111 = scmp.eq.s32.totalorder %s17, 1
    %p112 = por %p110, %p111
    %p113 = scmp.ne.s32.totalorder %s104, %s105
    %p114 = scmp.eq.s32.totalorder %s17, 0
    %p115 = por %p113, %p114
    %p116 = scmp.ne.s32.totalorder %s104, %s105
    %p117 = scmp.eq.s32.totalorder %s18, 1
    %p118 = por %p116, %p117
    %p120 = scmp.ne.s32.totalorder %s105, %s119
    %p121 = scmp.eq.s32.totalorder %s18, 0
    %p122 = por %p120, %p121
    %s124 = sadd.s32 %s123, 1
    %p127 = scmp.eq.s32.totalorder %s12, 1
    %p128 = scmp.ne.s32.totalorder %s123, %s125
    %p129 = scmp.eq.s32.totalorder %s12, 0
    %p130 = por %p128, %p129
    %p131 = scmp.ne.s32.totalorder %s123, %s125
    %p132 = scmp.eq.s32.totalorder %s17, 1
    %p133 = por %p131, %p132
    %p134 = scmp.ne.s32.totalorder %s125, %s126
    %p135 = scmp.eq.s32.totalorder %s17, 0
    %p136 = por %p134, %p135
    %p137 = scmp.ne.s32.totalorder %s125, %s126
    %p138 = scmp.eq.s32.totalorder %s18, 1
    %p139 = por %p137, %p138
    %p141 = scmp.ne.s32.totalorder %s126, %s140
    %p142 = scmp.eq.s32.totalorder %s18, 0
    %p143 = por %p141, %p142
    %s145 = sadd.s32 %s144, 1
    %p148 = scmp.eq.s32.totalorder %s12, 1
    %p149 = scmp.ne.s32.totalorder %s144, %s146
    %p150 = scmp.eq.s32.totalorder %s12, 0
    %p151 = por %p149, %p150
    %p152 = scmp.ne.s32.totalorder %s144, %s146
    %p153 = scmp.eq.s32.totalorder %s17, 1
    %p154 = por %p152, %p153
    %p155 = scmp.ne.s32.totalorder %s146, %s147
    %p156 = scmp.eq.s32.totalorder %s17, 0
    %p157 = por %p155, %p156
    %p158 = scmp.ne.s32.totalorder %s146, %s147
    %p159 = scmp.eq.s32.totalorder %s18, 1
    %p160 = por %p158, %p159
    %p162 = scmp.ne.s32.totalorder %s147, %s161
    %p163 = scmp.eq.s32.totalorder %s18, 0
    %p164 = por %p162, %p163
    %s165 = ssub.s32 %s19, %s31
    %p166 = scmp.eq.s32.totalorder %s165, 0
    %s168 = sadd.s32 %s167, 1
    %s169 = scalar_select %p166, %s167, %s168
    %p172 = pneg %p166
    %p173 = scmp.eq.s32.totalorder %s12, 1
    %p174 = por %p172, %p173
    %p175 = scmp.ne.s32.totalorder %s167, %s170
    %p176 = scmp.eq.s32.totalorder %s12, 0
    %p177 = por %p175, %p176
    %p178 = scmp.ne.s32.totalorder %s167, %s170
    %p179 = scmp.eq.s32.totalorder %s17, 1
    %p180 = por %p178, %p179
    %p181 = scmp.ne.s32.totalorder %s170, %s171
    %p182 = scmp.eq.s32.totalorder %s17, 0
    %p183 = por %p181, %p182
    %p184 = scmp.ne.s32.totalorder %s170, %s171
    %p185 = scmp.eq.s32.totalorder %s18, 1
    %p186 = por %p184, %p185
    %p188 = scmp.ne.s32.totalorder %s171, %s187
    %p189 = scmp.eq.s32.totalorder %s18, 0
    %p190 = por %p188, %p189
    %p191 = scmp.le.s32.totalorder 1, %s12
    %p192 = scmp.lt.s32.totalorder %s12, 3
    %p193 = pnand %p191, %p192
    %p194 = pneg %p193
    // Predicated region
    $region9: #{custom_lstm_classifier_forward.1} parent=5 // pred_check
      _
    $region10: #{custom_lstm_classifier_forward.1} parent=5 // pred_check_branch
      %196 = sbr.rel (%p193) target = $region12
    $region11: #{custom_lstm_classifier_forward.1} parent=5 // pred_region
      %s197 = ssub.s32 %s12, 1
      // Predicated region
      $region13: #{custom_lstm_classifier_forward.1} parent=11 // pred_check
        %p198 = pneg %p73
      $region14: #{custom_lstm_classifier_forward.1} parent=11 // pred_check_branch
        %200 = sbr.rel (%p198) target = $region16
      $region15: #{custom_lstm_classifier_forward.1} parent=11 // pred_region
        _
      $region16: #{custom_lstm_classifier_forward.1} parent=11 // pred_fallthru
        _
      // Predicated region
      $region17: #{custom_lstm_classifier_forward.1} parent=11 // pred_check
        %p201 = pneg %p94
      $region18: #{custom_lstm_classifier_forward.1} parent=11 // pred_check_branch
        %203 = sbr.rel (%p201) target = $region20
      $region19: #{custom_lstm_classifier_forward.1} parent=11 // pred_region
        _
      $region20: #{custom_lstm_classifier_forward.1} parent=11 // pred_fallthru
        _
      // Predicated region
      $region21: #{custom_lstm_classifier_forward.1} parent=11 // pred_check
        %p204 = pneg %p115
      $region22: #{custom_lstm_classifier_forward.1} parent=11 // pred_check_branch
        %206 = sbr.rel (%p204) target = $region24
      $region23: #{custom_lstm_classifier_forward.1} parent=11 // pred_region
        _
      $region24: #{custom_lstm_classifier_forward.1} parent=11 // pred_fallthru
        _
      // Predicated region
      $region25: #{custom_lstm_classifier_forward.1} parent=11 // pred_check
        %p207 = pneg %p136
      $region26: #{custom_lstm_classifier_forward.1} parent=11 // pred_check_branch
        %209 = sbr.rel (%p207) target = $region28
      $region27: #{custom_lstm_classifier_forward.1} parent=11 // pred_region
        _
      $region28: #{custom_lstm_classifier_forward.1} parent=11 // pred_fallthru
        _
      // Predicated region
      $region29: #{custom_lstm_classifier_forward.1} parent=11 // pred_check
        %p210 = pneg %p157
      $region30: #{custom_lstm_classifier_forward.1} parent=11 // pred_check_branch
        %212 = sbr.rel (%p210) target = $region32
      $region31: #{custom_lstm_classifier_forward.1} parent=11 // pred_region
        _
      $region32: #{custom_lstm_classifier_forward.1} parent=11 // pred_fallthru
        _
    $region12: #{custom_lstm_classifier_forward.1} parent=5 // pred_fallthru
      _
    %p213 = scmp.lt.s32.totalorder %s12, 2
    // Predicated region
    $region33: #{custom_lstm_classifier_forward.1} parent=5 // pred_check
      %p214 = pneg %p213
    $region34: #{custom_lstm_classifier_forward.1} parent=5 // pred_check_branch
      %216 = sbr.rel (%p214) target = $region36
    $region35: #{custom_lstm_classifier_forward.1} parent=5 // pred_region
      // Predicated region
      $region37: #{custom_lstm_classifier_forward.1} parent=35 // pred_check
        %p217 = pneg %p46
      $region38: #{custom_lstm_classifier_forward.1} parent=35 // pred_check_branch
        %219 = sbr.rel (%p217) target = $region40
      $region39: #{custom_lstm_classifier_forward.1} parent=35 // pred_region
        %s220 = smul.u32 4, %s20
        %p221 = scmp.lt.s32.totalorder %s220, 7
        %s222 = scalar_select %p221, %s220, 7
        %p223 = scmp.lt.s32.totalorder %s19, 0
        %s224 = scalar_select %p223, %s19, 0
        %s225 = sadd.s32 %s224, %s222
        %s226 = smul.addr %s225, 8
        %s227 = scalar_lea.vmem %s0, %s226
        %s228 = smul.u32 4, %s20
      $region40: #{custom_lstm_classifier_forward.1} parent=35 // pred_fallthru
        _
    $region36: #{custom_lstm_classifier_forward.1} parent=5 // pred_fallthru
      _
    %p229 = scmp.le.s32.totalorder 1, %s12
    %p230 = scmp.lt.s32.totalorder %s12, 3
    %p231 = pnand %p229, %p230
    %p232 = pneg %p231
    // Predicated region
    $region41: #{custom_lstm_classifier_forward.1} parent=5 // pred_check
      _
    $region42: #{custom_lstm_classifier_forward.1} parent=5 // pred_check_branch
      %234 = sbr.rel (%p231) target = $region44
    $region43: #{custom_lstm_classifier_forward.1} parent=5 // pred_region
      %s235 = ssub.s32 %s12, 1
      %s236 = smul.u32 4, %s22
      %p237 = scmp.lt.s32.totalorder %s236, 7
      %s238 = scalar_select %p237, %s236, 7
      %p239 = scmp.lt.s32.totalorder %s21, 0
      %s240 = scalar_select %p239, %s21, 0
      %s241 = sadd.s32 %s240, %s238
      %s242 = smul.addr %s241, 8
      %s243 = scalar_lea.vmem %s0, %s242
      %p244 = pneg %p52
      %p245 = pneg %p49
      %p246 = pneg %p73
      %p247 = pneg %p70
      %p248 = pneg %p94
      %p249 = pneg %p91
      %p250 = pneg %p115
      %p251 = pneg %p112
      %p252 = pneg %p136
      %p253 = pneg %p133
      %p254 = pneg %p157
      %p255 = pneg %p154
      %p256 = pneg %p183
      %p257 = pneg %p180
      %p258 = scmp.lt.s32.totalorder %s21, 0
      %s259 = scalar_select %p258, %s21, 0
      %s260 = smul.addr %s259, 8
      %s261 = scalar_lea.vmem %s6, %s260
      %s262 = smul.u32 4, %s22
      %p263 = scmp.lt.s32.totalorder %s262, 7
      %s264 = scalar_select %p263, %s262, 7
      %p265 = scmp.lt.s32.totalorder %s21, 0
      %s266 = scalar_select %p265, %s21, 0
      %s267 = sadd.s32 %s266, %s264
      %s268 = smul.addr %s267, 8
      %s269 = scalar_lea.vmem %s0, %s268
      %s270 = smul.u32 4, %s22
      %p271 = scmp.lt.s32.totalorder %s21, 0
      %s272 = scalar_select %p271, %s21, 0
      %s273 = smul.addr %s272, 8
      %s274 = scalar_lea.vmem %s6, %s273
      %p276 = scmp.eq.s32.totalorder %s22, 0
      // Predicated region
      $region45: #{custom_lstm_classifier_forward.1} parent=43 // pred_check
        %p277 = pneg %p276
      $region46: #{custom_lstm_classifier_forward.1} parent=43 // pred_check_branch
        %279 = sbr.rel (%p277) target = $region48
      $region47: #{custom_lstm_classifier_forward.1} parent=43 // pred_region
        %280 = vst [vmem:[#allocation2] sm:$0xff] 0.0
        %281 = vst [vmem:[#allocation3] sm:$0xff] 0.0
      $region48: #{custom_lstm_classifier_forward.1} parent=43 // pred_fallthru
        _
      %v282 = vld [vmem:[%s269] sm:$0xff]
      %v283 = vld [vmem:[%s269 + $0x8] sm:$0xff]
      %v284 = vld [vmem:[%s269 + $0x10] sm:$0xff]
      %v285 = vld [vmem:[%s269 + $0x18] sm:$0xff]
      %v286 = vpack.c.bf16 %v283, %v282
      %v287 = vpack.c.bf16 %v285, %v284
      %v288 = vld [vmem:[%s1] sm:$0xff]
      %v289 = vld [vmem:[%s1 + $0x8] sm:$0xff]
      %v290 = vld [vmem:[%s1 + $0x10] sm:$0xff]
      %v291 = vld [vmem:[%s1 + $0x18] sm:$0xff]
      %v292 = vld [vmem:[%s3] sm:$0xf]
      %v294 = vlaneseq
      %v295 = vshrl.u32 %v294, 7
      %v296 = vsub.s32 0, %v295
      %v297 = vrot.slane %v292, %v296
      %v298 = vlaneseq
      %v299 = vshrl.u32 %v298, 7
      %v300 = vsub.s32 1, %v299
      %v301 = vrot.slane %v292, %v300
      %v302 = vlaneseq
      %v303 = vshrl.u32 %v302, 7
      %v304 = vsub.s32 2, %v303
      %v305 = vrot.slane %v292, %v304
      %v306 = vlaneseq
      %v307 = vshrl.u32 %v306, 7
      %v308 = vsub.s32 3, %v307
      %v309 = vrot.slane %v292, %v308
      %v318 = vunpack.c.l.b16 %v288
      %v319 = vunpack.c.h.b16 %v288
      %v320 = vunpack.c.l.b16 %v289
      %v321 = vunpack.c.h.b16 %v289
      %v322 = vunpack.c.l.b16 %v290
      %v323 = vunpack.c.h.b16 %v290
      %v324 = vunpack.c.l.b16 %v291
      %v325 = vunpack.c.h.b16 %v291
      %v326 = vpack.c.b16 %v322, %v318
      %v327 = vpack.c.b16 %v323, %v319
      %v328 = vpack.c.b16 %v324, %v320
      %v329 = vpack.c.b16 %v325, %v321
      %vm334 = vcmask 130048
      %v336 = vsel %vm334, %v286, 0
      %v339 = vsel %vm334, %v287, 0
      %341 = vmatprep.subr.bf16.mxu0 %v327
      %342 = vmatpush1.bf16.msra.mxu0 %v326
      %343 = vmatprep.subr.bf16.mxu0 0
      %344 = vmatpush1.bf16.msra.mxu0 0
      %345 = vmatprep.subr.bf16.mxu0 0
      %346 = vmatpush1.bf16.msra.mxu0 0
      %347 = vmatprep.subr.bf16.mxu0 0
      %348 = vmatpush1.bf16.msra.mxu0 0
      %349 = vmatprep.subr.bf16.mxu0 0
      %350 = vmatpush1.bf16.msra.mxu0 0
      %351 = vmatprep.subr.bf16.mxu0 0
      %352 = vmatpush1.bf16.msra.mxu0 0
      %353 = vmatprep.subr.bf16.mxu0 0
      %354 = vmatpush1.bf16.msra.mxu0 0
      %355 = vmatprep.subr.bf16.mxu0 0
      %356 = vmatpush1.bf16.msra.mxu0 0
      %357 = vmatprep.subr.bf16.mxu0 0
      %358 = vmatpush1.bf16.msra.mxu0 0
      %359 = vmatprep.subr.bf16.mxu0 0
      %360 = vmatpush1.bf16.msra.mxu0 0
      %361 = vmatprep.subr.bf16.mxu0 0
      %362 = vmatpush1.bf16.msra.mxu0 0
      %363 = vmatprep.subr.bf16.mxu0 0
      %364 = vmatpush1.bf16.msra.mxu0 0
      %365 = vmatprep.subr.bf16.mxu0 0
      %366 = vmatpush1.bf16.msra.mxu0 0
      %367 = vmatprep.subr.bf16.mxu0 0
      %368 = vmatpush1.bf16.msra.mxu0 0
      %369 = vmatprep.subr.bf16.mxu0 0
      %370 = vmatpush1.bf16.msra.mxu0 0
      %371 = vmatprep.subr.bf16.mxu0 0
      %372 = vmatpush1.bf16.msra.mxu0 0
      %373 = vmatprep.mubr.bf16.mxu0 0
      %374 = vmatmul.mubr.bf16.gmra.mrb[0].mxu0 %v336
      %v375 = vpop.f32.mrb[0].mxu0
      %v376 = vadd.f32 %v297, %v375
      %v377 = vpop.f32.mrb[0].mxu0
      %v378 = vadd.f32 %v301, %v377
      %v379 = vpop.f32.mrb[0].mxu0
      %v380 = vadd.f32 %v297, %v379
      %v381 = vpop.f32.mrb[0].mxu0
      %v382 = vadd.f32 %v301, %v381
      %383 = vmatprep.mubr.bf16.mxu0 0
      %384 = vmatmul.mubr.bf16.gmra.mrb[0].mxu0 %v339
      %v385 = vpop.f32.mrb[0].mxu0
      %v386 = vadd.f32 %v297, %v385
      %v387 = vpop.f32.mrb[0].mxu0
      %v388 = vadd.f32 %v301, %v387
      %v389 = vpop.f32.mrb[0].mxu0
      %v390 = vadd.f32 %v297, %v389
      %v391 = vpop.f32.mrb[0].mxu0
      %v392 = vadd.f32 %v301, %v391
      %393 = vdwg.mxu0
      %394 = vmatprep.subr.bf16.mxu0 %v329
      %395 = vmatpush1.bf16.msra.mxu0 %v328
      %396 = vmatprep.subr.bf16.mxu0 0
      %397 = vmatpush1.bf16.msra.mxu0 0
      %398 = vmatprep.subr.bf16.mxu0 0
      %399 = vmatpush1.bf16.msra.mxu0 0
      %400 = vmatprep.subr.bf16.mxu0 0
      %401 = vmatpush1.bf16.msra.mxu0 0
      %402 = vmatprep.subr.bf16.mxu0 0
      %403 = vmatpush1.bf16.msra.mxu0 0
      %404 = vmatprep.subr.bf16.mxu0 0
      %405 = vmatpush1.bf16.msra.mxu0 0
      %406 = vmatprep.subr.bf16.mxu0 0
      %407 = vmatpush1.bf16.msra.mxu0 0
      %408 = vmatprep.subr.bf16.mxu0 0
      %409 = vmatpush1.bf16.msra.mxu0 0
      %410 = vmatprep.subr.bf16.mxu0 0
      %411 = vmatpush1.bf16.msra.mxu0 0
      %412 = vmatprep.subr.bf16.mxu0 0
      %413 = vmatpush1.bf16.msra.mxu0 0
      %414 = vmatprep.subr.bf16.mxu0 0
      %415 = vmatpush1.bf16.msra.mxu0 0
      %416 = vmatprep.subr.bf16.mxu0 0
      %417 = vmatpush1.bf16.msra.mxu0 0
      %418 = vmatprep.subr.bf16.mxu0 0
      %419 = vmatpush1.bf16.msra.mxu0 0
      %420 = vmatprep.subr.bf16.mxu0 0
      %421 = vmatpush1.bf16.msra.mxu0 0
      %422 = vmatprep.subr.bf16.mxu0 0
      %423 = vmatpush1.bf16.msra.mxu0 0
      %424 = vmatprep.subr.bf16.mxu0 0
      %425 = vmatpush1.bf16.msra.mxu0 0
      %426 = vmatprep.mubr.bf16.mxu0 0
      %427 = vmatmul.mubr.bf16.gmra.mrb[0].mxu0 %v336
      %v428 = vpop.f32.mrb[0].mxu0
      %v429 = vadd.f32 %v305, %v428
      %v430 = vpop.f32.mrb[0].mxu0
      %v431 = vadd.f32 %v309, %v430
      %v432 = vpop.f32.mrb[0].mxu0
      %v433 = vadd.f32 %v305, %v432
      %v434 = vpop.f32.mrb[0].mxu0
      %v435 = vadd.f32 %v309, %v434
      %436 = vmatprep.mubr.bf16.mxu0 0
      %437 = vmatmul.mubr.bf16.gmra.mrb[0].mxu0 %v339
      %v438 = vpop.f32.mrb[0].mxu0
      %v439 = vadd.f32 %v305, %v438
      %v440 = vpop.f32.mrb[0].mxu0
      %v441 = vadd.f32 %v309, %v440
      %v442 = vpop.f32.mrb[0].mxu0
      %v443 = vadd.f32 %v305, %v442
      %v444 = vpop.f32.mrb[0].mxu0
      %v445 = vadd.f32 %v309, %v444
      %446 = vdwg.mxu0
      %v447 = vld [vmem:[%s2] sm:$0xff]
      %v448 = vld [vmem:[%s2 + $0x8] sm:$0xff]
      %v449 = vld [vmem:[%s2 + $0x10] sm:$0xff]
      %v450 = vld [vmem:[%s2 + $0x18] sm:$0xff]
      %v451 = vld [vmem:[%s2 + $0x20] sm:$0xff]
      %v452 = vld [vmem:[%s2 + $0x28] sm:$0xff]
      %v453 = vld [vmem:[%s2 + $0x30] sm:$0xff]
      %v454 = vld [vmem:[%s2 + $0x38] sm:$0xff]
      %v455 = vld [vmem:[%s2 + $0x40] sm:$0xff]
      %v456 = vld [vmem:[%s2 + $0x48] sm:$0xff]
      %v457 = vld [vmem:[%s2 + $0x50] sm:$0xff]
      %v458 = vld [vmem:[%s2 + $0x58] sm:$0xff]
      %v459 = vld [vmem:[%s2 + $0x60] sm:$0xff]
      %v460 = vld [vmem:[%s2 + $0x68] sm:$0xff]
      %v461 = vld [vmem:[%s2 + $0x70] sm:$0xff]
      %v462 = vld [vmem:[%s2 + $0x78] sm:$0xff]
      %v463 = vld [vmem:[%s2 + $0x80] sm:$0xff]
      %v464 = vld [vmem:[%s2 + $0x88] sm:$0xff]
      %v465 = vld [vmem:[%s2 + $0x90] sm:$0xff]
      %v466 = vld [vmem:[%s2 + $0x98] sm:$0xff]
      %v467 = vld [vmem:[%s2 + $0xa0] sm:$0xff]
      %v468 = vld [vmem:[%s2 + $0xa8] sm:$0xff]
      %v469 = vld [vmem:[%s2 + $0xb0] sm:$0xff]
      %v470 = vld [vmem:[%s2 + $0xb8] sm:$0xff]
      %v471 = vld [vmem:[%s2 + $0xc0] sm:$0xff]
      %v472 = vld [vmem:[%s2 + $0xc8] sm:$0xff]
      %v473 = vld [vmem:[%s2 + $0xd0] sm:$0xff]
      %v474 = vld [vmem:[%s2 + $0xd8] sm:$0xff]
      %v475 = vld [vmem:[%s2 + $0xe0] sm:$0xff]
      %v476 = vld [vmem:[%s2 + $0xe8] sm:$0xff]
      %v477 = vld [vmem:[%s2 + $0xf0] sm:$0xff]
      %v478 = vld [vmem:[%s2 + $0xf8] sm:$0xff]
      %v479 = vld [vmem:[#allocation2] sm:$0xff]
      %v480 = vld [vmem:[#allocation3] sm:$0xff]
      %v481 = vpack.c.bf16 %v479, %v479
      %v514 = vunpack.c.l.b16 %v447
      %v515 = vunpack.c.h.b16 %v447
      %v516 = vunpack.c.l.b16 %v448
      %v517 = vunpack.c.h.b16 %v448
      %v518 = vunpack.c.l.b16 %v449
      %v519 = vunpack.c.h.b16 %v449
      %v520 = vunpack.c.l.b16 %v450
      %v521 = vunpack.c.h.b16 %v450
      %v522 = vunpack.c.l.b16 %v451
      %v523 = vunpack.c.h.b16 %v451
      %v524 = vunpack.c.l.b16 %v452
      %v525 = vunpack.c.h.b16 %v452
      %v526 = vunpack.c.l.b16 %v453
      %v527 = vunpack.c.h.b16 %v453
      %v528 = vunpack.c.l.b16 %v454
      %v529 = vunpack.c.h.b16 %v454
      %v530 = vunpack.c.l.b16 %v455
      %v531 = vunpack.c.h.b16 %v455
      %v532 = vunpack.c.l.b16 %v456
      %v533 = vunpack.c.h.b16 %v456
      %v534 = vunpack.c.l.b16 %v457
      %v535 = vunpack.c.h.b16 %v457
      %v536 = vunpack.c.l.b16 %v458
      %v537 = vunpack.c.h.b16 %v458
      %v538 = vunpack.c.l.b16 %v459
      %v539 = vunpack.c.h.b16 %v459
      %v540 = vunpack.c.l.b16 %v460
      %v541 = vunpack.c.h.b16 %v460
      %v542 = vunpack.c.l.b16 %v461
      %v543 = vunpack.c.h.b16 %v461
      %v544 = vunpack.c.l.b16 %v462
      %v545 = vunpack.c.h.b16 %v462
      %v546 = vunpack.c.l.b16 %v463
      %v547 = vunpack.c.h.b16 %v463
      %v548 = vunpack.c.l.b16 %v464
      %v549 = vunpack.c.h.b16 %v464
      %v550 = vunpack.c.l.b16 %v465
      %v551 = vunpack.c.h.b16 %v465
      %v552 = vunpack.c.l.b16 %v466
      %v553 = vunpack.c.h.b16 %v466
      %v554 = vunpack.c.l.b16 %v467
      %v555 = vunpack.c.h.b16 %v467
      %v556 = vunpack.c.l.b16 %v468
      %v557 = vunpack.c.h.b16 %v468
      %v558 = vunpack.c.l.b16 %v469
      %v559 = vunpack.c.h.b16 %v469
      %v560 = vunpack.c.l.b16 %v470
      %v561 = vunpack.c.h.b16 %v470
      %v562 = vunpack.c.l.b16 %v471
      %v563 = vunpack.c.h.b16 %v471
      %v564 = vunpack.c.l.b16 %v472
      %v565 = vunpack.c.h.b16 %v472
      %v566 = vunpack.c.l.b16 %v473
      %v567 = vunpack.c.h.b16 %v473
      %v568 = vunpack.c.l.b16 %v474
      %v569 = vunpack.c.h.b16 %v474
      %v570 = vunpack.c.l.b16 %v475
      %v571 = vunpack.c.h.b16 %v475
      %v572 = vunpack.c.l.b16 %v476
      %v573 = vunpack.c.h.b16 %v476
      %v574 = vunpack.c.l.b16 %v477
      %v575 = vunpack.c.h.b16 %v477
      %v576 = vunpack.c.l.b16 %v478
      %v577 = vunpack.c.h.b16 %v478
      %v578 = vpack.c.b16 %v518, %v514
      %v579 = vpack.c.b16 %v519, %v515
      %v580 = vpack.c.b16 %v520, %v516
      %v581 = vpack.c.b16 %v521, %v517
      %v582 = vpack.c.b16 %v526, %v522
      %v583 = vpack.c.b16 %v527, %v523
      %v584 = vpack.c.b16 %v528, %v524
      %v585 = vpack.c.b16 %v529, %v525
      %v586 = vpack.c.b16 %v534, %v530
      %v587 = vpack.c.b16 %v535, %v531
      %v588 = vpack.c.b16 %v536, %v532
      %v589 = vpack.c.b16 %v537, %v533
      %v590 = vpack.c.b16 %v542, %v538
      %v591 = vpack.c.b16 %v543, %v539
      %v592 = vpack.c.b16 %v544, %v540
      %v593 = vpack.c.b16 %v545, %v541
      %v594 = vpack.c.b16 %v550, %v546
      %v595 = vpack.c.b16 %v551, %v547
      %v596 = vpack.c.b16 %v552, %v548
      %v597 = vpack.c.b16 %v553, %v549
      %v598 = vpack.c.b16 %v558, %v554
      %v599 = vpack.c.b16 %v559, %v555
      %v600 = vpack.c.b16 %v560, %v556
      %v601 = vpack.c.b16 %v561, %v557
      %v602 = vpack.c.b16 %v566, %v562
      %v603 = vpack.c.b16 %v567, %v563
      %v604 = vpack.c.b16 %v568, %v564
      %v605 = vpack.c.b16 %v569, %v565
      %v606 = vpack.c.b16 %v574, %v570
      %v607 = vpack.c.b16 %v575, %v571
      %v608 = vpack.c.b16 %v576, %v572
      %v609 = vpack.c.b16 %v577, %v573
      %642 = vmatprep.subr.bf16.mxu0 %v579
      %643 = vmatpush1.bf16.msra.mxu0 %v578
      %644 = vmatprep.subr.bf16.mxu0 %v583
      %645 = vmatpush1.bf16.msra.mxu0 %v582
      %646 = vmatprep.subr.bf16.mxu0 %v587
      %647 = vmatpush1.bf16.msra.mxu0 %v586
      %648 = vmatprep.subr.bf16.mxu0 %v591
      %649 = vmatpush1.bf16.msra.mxu0 %v590
      %650 = vmatprep.subr.bf16.mxu0 %v595
      %651 = vmatpush1.bf16.msra.mxu0 %v594
      %652 = vmatprep.subr.bf16.mxu0 %v599
      %653 = vmatpush1.bf16.msra.mxu0 %v598
      %654 = vmatprep.subr.bf16.mxu0 %v603
      %655 = vmatpush1.bf16.msra.mxu0 %v602
      %656 = vmatprep.subr.bf16.mxu0 %v607
      %657 = vmatpush1.bf16.msra.mxu0 %v606
      %658 = vmatprep.subr.bf16.mxu0 0
      %659 = vmatpush1.bf16.msra.mxu0 0
      %660 = vmatprep.subr.bf16.mxu0 0
      %661 = vmatpush1.bf16.msra.mxu0 0
      %662 = vmatprep.subr.bf16.mxu0 0
      %663 = vmatpush1.bf16.msra.mxu0 0
      %664 = vmatprep.subr.bf16.mxu0 0
      %665 = vmatpush1.bf16.msra.mxu0 0
      %666 = vmatprep.subr.bf16.mxu0 0
      %667 = vmatpush1.bf16.msra.mxu0 0
      %668 = vmatprep.subr.bf16.mxu0 0
      %669 = vmatpush1.bf16.msra.mxu0 0
      %670 = vmatprep.subr.bf16.mxu0 0
      %671 = vmatpush1.bf16.msra.mxu0 0
      %672 = vmatprep.subr.bf16.mxu0 0
      %673 = vmatpush1.bf16.msra.mxu0 0
      %674 = vmatprep.mubr.bf16.mxu0 0
      %675 = vmatmul.mubr.bf16.gmra.mrb[0].mxu0 %v481
      %v676 = vpop.f32.mrb[0].mxu0
      %v677 = vadd.f32 0.0, %v676
      %v678 = vpop.f32.mrb[0].mxu0
      %v679 = vadd.f32 0.0, %v678
      %v680 = vpop.f32.mrb[0].mxu0
      %v681 = vpop.f32.mrb[0].mxu0
      %682 = vdwg.mxu0
      %683 = vmatprep.subr.bf16.mxu0 %v581
      %684 = vmatpush1.bf16.msra.mxu0 %v580
      %685 = vmatprep.subr.bf16.mxu0 %v585
      %686 = vmatpush1.bf16.msra.mxu0 %v584
      %687 = vmatprep.subr.bf16.mxu0 %v589
      %688 = vmatpush1.bf16.msra.mxu0 %v588
      %689 = vmatprep.subr.bf16.mxu0 %v593
      %690 = vmatpush1.bf16.msra.mxu0 %v592
      %691 = vmatprep.subr.bf16.mxu0 %v597
      %692 = vmatpush1.bf16.msra.mxu0 %v596
      %693 = vmatprep.subr.bf16.mxu0 %v601
      %694 = vmatpush1.bf16.msra.mxu0 %v600
      %695 = vmatprep.subr.bf16.mxu0 %v605
      %696 = vmatpush1.bf16.msra.mxu0 %v604
      %697 = vmatprep.subr.bf16.mxu0 %v609
      %698 = vmatpush1.bf16.msra.mxu0 %v608
      %699 = vmatprep.subr.bf16.mxu0 0
      %700 = vmatpush1.bf16.msra.mxu0 0
      %701 = vmatprep.subr.bf16.mxu0 0
      %702 = vmatpush1.bf16.msra.mxu0 0
      %703 = vmatprep.subr.bf16.mxu0 0
      %704 = vmatpush1.bf16.msra.mxu0 0
      %705 = vmatprep.subr.bf16.mxu0 0
      %706 = vmatpush1.bf16.msra.mxu0 0
      %707 = vmatprep.subr.bf16.mxu0 0
      %708 = vmatpush1.bf16.msra.mxu0 0
      %709 = vmatprep.subr.bf16.mxu0 0
      %710 = vmatpush1.bf16.msra.mxu0 0
      %711 = vmatprep.subr.bf16.mxu0 0
      %712 = vmatpush1.bf16.msra.mxu0 0
      %713 = vmatprep.subr.bf16.mxu0 0
      %714 = vmatpush1.bf16.msra.mxu0 0
      %715 = vmatprep.mubr.bf16.mxu0 0
      %716 = vmatmul.mubr.bf16.gmra.mrb[0].mxu0 %v481
      %v717 = vpop.f32.mrb[0].mxu0
      %v718 = vadd.f32 0.0, %v717
      %v719 = vpop.f32.mrb[0].mxu0
      %v720 = vadd.f32 0.0, %v719
      %v721 = vpop.f32.mrb[0].mxu0
      %v722 = vpop.f32.mrb[0].mxu0
      %723 = vdwg.mxu0
      %v724 = vadd.f32 %v376, %v677
      %v725 = vadd.f32 %v378, %v679
      %v726 = vadd.f32 %v429, %v718
      %v727 = vadd.f32 %v431, %v720
      %v728 = vxor.u32 %v724, 2147483648
      %v729 = vxor.u32 %v725, 2147483648
      %v730 = vxor.u32 %v726, 2147483648
      %v731 = vmul.f32 %v728, 1.442695
      %v732 = vpow.pop %v731
      %v733 = vmul.f32 %v729, 1.442695
      %v734 = vpow.pop %v733
      %v735 = vmul.f32 %v730, 1.442695
      %v736 = vpow.pop %v735
      %v737 = vadd.f32 %v732, 1.0
      %v738 = vadd.f32 %v734, 1.0
      %v739 = vadd.f32 %v736, 1.0
      %v740 = vrcp.pop %v737
      %v741 = vmul.f32 1.0, %v740
      %v742 = vrcp.pop %v738
      %v743 = vmul.f32 1.0, %v742
      %v744 = vrcp.pop %v739
      %v745 = vmul.f32 1.0, %v744
      %v746 = vtanh.pop %v727
      %v747 = vmul.f32 %v741, %v480
      %v748 = vmul.f32 %v743, %v746
      %v749 = vadd.f32 %v747, %v748
      %v750 = vtanh.pop %v749
      %v751 = vmul.f32 %v745, %v750
      %v752 = vpack.c.bf16 %v751, %v751
      %753 = vmatprep.subr.bf16.mxu0 %v579
      %754 = vmatpush1.bf16.msra.mxu0 %v578
      %755 = vmatprep.subr.bf16.mxu0 %v583
      %756 = vmatpush1.bf16.msra.mxu0 %v582
      %757 = vmatprep.subr.bf16.mxu0 %v587
      %758 = vmatpush1.bf16.msra.mxu0 %v586
      %759 = vmatprep.subr.bf16.mxu0 %v591
      %760 = vmatpush1.bf16.msra.mxu0 %v590
      %761 = vmatprep.subr.bf16.mxu0 %v595
      %762 = vmatpush1.bf16.msra.mxu0 %v594
      %763 = vmatprep.subr.bf16.mxu0 %v599
      %764 = vmatpush1.bf16.msra.mxu0 %v598
      %765 = vmatprep.subr.bf16.mxu0 %v603
      %766 = vmatpush1.bf16.msra.mxu0 %v602
      %767 = vmatprep.subr.bf16.mxu0 %v607
      %768 = vmatpush1.bf16.msra.mxu0 %v606
      %769 = vmatprep.subr.bf16.mxu0 0
      %770 = vmatpush1.bf16.msra.mxu0 0
      %771 = vmatprep.subr.bf16.mxu0 0
      %772 = vmatpush1.bf16.msra.mxu0 0
      %773 = vmatprep.subr.bf16.mxu0 0
      %774 = vmatpush1.bf16.msra.mxu0 0
      %775 = vmatprep.subr.bf16.mxu0 0
      %776 = vmatpush1.bf16.msra.mxu0 0
      %777 = vmatprep.subr.bf16.mxu0 0
      %778 = vmatpush1.bf16.msra.mxu0 0
      %779 = vmatprep.subr.bf16.mxu0 0
      %780 = vmatpush1.bf16.msra.mxu0 0
      %781 = vmatprep.subr.bf16.mxu0 0
      %782 = vmatpush1.bf16.msra.mxu0 0
      %783 = vmatprep.subr.bf16.mxu0 0
      %784 = vmatpush1.bf16.msra.mxu0 0
      %785 = vmatprep.mubr.bf16.mxu0 0
      %786 = vmatmul.mubr.bf16.gmra.mrb[0].mxu0 %v752
      %v787 = vpop.f32.mrb[0].mxu0
      %v788 = vadd.f32 0.0, %v787
      %v789 = vpop.f32.mrb[0].mxu0
      %v790 = vadd.f32 0.0, %v789
      %v791 = vpop.f32.mrb[0].mxu0
      %v792 = vpop.f32.mrb[0].mxu0
      %793 = vdwg.mxu0
      %794 = vmatprep.subr.bf16.mxu0 %v581
      %795 = vmatpush1.bf16.msra.mxu0 %v580
      %796 = vmatprep.subr.bf16.mxu0 %v585
      %797 = vmatpush1.bf16.msra.mxu0 %v584
      %798 = vmatprep.subr.bf16.mxu0 %v589
      %799 = vmatpush1.bf16.msra.mxu0 %v588
      %800 = vmatprep.subr.bf16.mxu0 %v593
      %801 = vmatpush1.bf16.msra.mxu0 %v592
      %802 = vmatprep.subr.bf16.mxu0 %v597
      %803 = vmatpush1.bf16.msra.mxu0 %v596
      %804 = vmatprep.subr.bf16.mxu0 %v601
      %805 = vmatpush1.bf16.msra.mxu0 %v600
      %806 = vmatprep.subr.bf16.mxu0 %v605
      %807 = vmatpush1.bf16.msra.mxu0 %v604
      %808 = vmatprep.subr.bf16.mxu0 %v609
      %809 = vmatpush1.bf16.msra.mxu0 %v608
      %810 = vmatprep.subr.bf16.mxu0 0
      %811 = vmatpush1.bf16.msra.mxu0 0
      %812 = vmatprep.subr.bf16.mxu0 0
      %813 = vmatpush1.bf16.msra.mxu0 0
      %814 = vmatprep.subr.bf16.mxu0 0
      %815 = vmatpush1.bf16.msra.mxu0 0
      %816 = vmatprep.subr.bf16.mxu0 0
      %817 = vmatpush1.bf16.msra.mxu0 0
      %818 = vmatprep.subr.bf16.mxu0 0
      %819 = vmatpush1.bf16.msra.mxu0 0
      %820 = vmatprep.subr.bf16.mxu0 0
      %821 = vmatpush1.bf16.msra.mxu0 0
      %822 = vmatprep.subr.bf16.mxu0 0
      %823 = vmatpush1.bf16.msra.mxu0 0
      %824 = vmatprep.subr.bf16.mxu0 0
      %825 = vmatpush1.bf16.msra.mxu0 0
      %826 = vmatprep.mubr.bf16.mxu0 0
      %827 = vmatmul.mubr.bf16.gmra.mrb[0].mxu0 %v752
      %v828 = vpop.f32.mrb[0].mxu0
      %v829 = vadd.f32 0.0, %v828
      %v830 = vpop.f32.mrb[0].mxu0
      %v831 = vadd.f32 0.0, %v830
      %v832 = vpop.f32.mrb[0].mxu0
      %v833 = vpop.f32.mrb[0].mxu0
      %834 = vdwg.mxu0
      %v835 = vadd.f32 %v380, %v788
      %v836 = vadd.f32 %v382, %v790
      %v837 = vadd.f32 %v433, %v829
      %v838 = vadd.f32 %v435, %v831
      %v839 = vxor.u32 %v835, 2147483648
      %v840 = vxor.u32 %v836, 2147483648
      %v841 = vxor.u32 %v837, 2147483648
      %v842 = vmul.f32 %v839, 1.442695
      %v843 = vpow.pop %v842
      %v844 = vmul.f32 %v840, 1.442695
      %v845 = vpow.pop %v844
      %v846 = vmul.f32 %v841, 1.442695
      %v847 = vpow.pop %v846
      %v848 = vadd.f32 %v843, 1.0
      %v849 = vadd.f32 %v845, 1.0
      %v850 = vadd.f32 %v847, 1.0
      %v851 = vrcp.pop %v848
      %v852 = vmul.f32 1.0, %v851
      %v853 = vrcp.pop %v849
      %v854 = vmul.f32 1.0, %v853
      %v855 = vrcp.pop %v850
      %v856 = vmul.f32 1.0, %v855
      %v857 = vtanh.pop %v838
      %v858 = vmul.f32 %v852, %v749
      %v859 = vmul.f32 %v854, %v857
      %v860 = vadd.f32 %v858, %v859
      %v861 = vtanh.pop %v860
      %v862 = vmul.f32 %v856, %v861
      %v863 = vpack.c.bf16 %v862, %v862
      %864 = vmatprep.subr.bf16.mxu0 %v579
      %865 = vmatpush1.bf16.msra.mxu0 %v578
      %866 = vmatprep.subr.bf16.mxu0 %v583
      %867 = vmatpush1.bf16.msra.mxu0 %v582
      %868 = vmatprep.subr.bf16.mxu0 %v587
      %869 = vmatpush1.bf16.msra.mxu0 %v586
      %870 = vmatprep.subr.bf16.mxu0 %v591
      %871 = vmatpush1.bf16.msra.mxu0 %v590
      %872 = vmatprep.subr.bf16.mxu0 %v595
      %873 = vmatpush1.bf16.msra.mxu0 %v594
      %874 = vmatprep.subr.bf16.mxu0 %v599
      %875 = vmatpush1.bf16.msra.mxu0 %v598
      %876 = vmatprep.subr.bf16.mxu0 %v603
      %877 = vmatpush1.bf16.msra.mxu0 %v602
      %878 = vmatprep.subr.bf16.mxu0 %v607
      %879 = vmatpush1.bf16.msra.mxu0 %v606
      %880 = vmatprep.subr.bf16.mxu0 0
      %881 = vmatpush1.bf16.msra.mxu0 0
      %882 = vmatprep.subr.bf16.mxu0 0
      %883 = vmatpush1.bf16.msra.mxu0 0
      %884 = vmatprep.subr.bf16.mxu0 0
      %885 = vmatpush1.bf16.msra.mxu0 0
      %886 = vmatprep.subr.bf16.mxu0 0
      %887 = vmatpush1.bf16.msra.mxu0 0
      %888 = vmatprep.subr.bf16.mxu0 0
      %889 = vmatpush1.bf16.msra.mxu0 0
      %890 = vmatprep.subr.bf16.mxu0 0
      %891 = vmatpush1.bf16.msra.mxu0 0
      %892 = vmatprep.subr.bf16.mxu0 0
      %893 = vmatpush1.bf16.msra.mxu0 0
      %894 = vmatprep.subr.bf16.mxu0 0
      %895 = vmatpush1.bf16.msra.mxu0 0
      %896 = vmatprep.mubr.bf16.mxu0 0
      %897 = vmatmul.mubr.bf16.gmra.mrb[0].mxu0 %v863
      %v898 = vpop.f32.mrb[0].mxu0
      %v899 = vadd.f32 0.0, %v898
      %v900 = vpop.f32.mrb[0].mxu0
      %v901 = vadd.f32 0.0, %v900
      %v902 = vpop.f32.mrb[0].mxu0
      %v903 = vpop.f32.mrb[0].mxu0
      %904 = vdwg.mxu0
      %905 = vmatprep.subr.bf16.mxu0 %v581
      %906 = vmatpush1.bf16.msra.mxu0 %v580
      %907 = vmatprep.subr.bf16.mxu0 %v585
      %908 = vmatpush1.bf16.msra.mxu0 %v584
      %909 = vmatprep.subr.bf16.mxu0 %v589
      %910 = vmatpush1.bf16.msra.mxu0 %v588
      %911 = vmatprep.subr.bf16.mxu0 %v593
      %912 = vmatpush1.bf16.msra.mxu0 %v592
      %913 = vmatprep.subr.bf16.mxu0 %v597
      %914 = vmatpush1.bf16.msra.mxu0 %v596
      %915 = vmatprep.subr.bf16.mxu0 %v601
      %916 = vmatpush1.bf16.msra.mxu0 %v600
      %917 = vmatprep.subr.bf16.mxu0 %v605
      %918 = vmatpush1.bf16.msra.mxu0 %v604
      %919 = vmatprep.subr.bf16.mxu0 %v609
      %920 = vmatpush1.bf16.msra.mxu0 %v608
      %921 = vmatprep.subr.bf16.mxu0 0
      %922 = vmatpush1.bf16.msra.mxu0 0
      %923 = vmatprep.subr.bf16.mxu0 0
      %924 = vmatpush1.bf16.msra.mxu0 0
      %925 = vmatprep.subr.bf16.mxu0 0
      %926 = vmatpush1.bf16.msra.mxu0 0
      %927 = vmatprep.subr.bf16.mxu0 0
      %928 = vmatpush1.bf16.msra.mxu0 0
      %929 = vmatprep.subr.bf16.mxu0 0
      %930 = vmatpush1.bf16.msra.mxu0 0
      %931 = vmatprep.subr.bf16.mxu0 0
      %932 = vmatpush1.bf16.msra.mxu0 0
      %933 = vmatprep.subr.bf16.mxu0 0
      %934 = vmatpush1.bf16.msra.mxu0 0
      %935 = vmatprep.subr.bf16.mxu0 0
      %936 = vmatpush1.bf16.msra.mxu0 0
      %937 = vmatprep.mubr.bf16.mxu0 0
      %938 = vmatmul.mubr.bf16.gmra.mrb[0].mxu0 %v863
      %v939 = vpop.f32.mrb[0].mxu0
      %v940 = vadd.f32 0.0, %v939
      %v941 = vpop.f32.mrb[0].mxu0
      %v942 = vadd.f32 0.0, %v941
      %v943 = vpop.f32.mrb[0].mxu0
      %v944 = vpop.f32.mrb[0].mxu0
      %945 = vdwg.mxu0
      %v946 = vadd.f32 %v386, %v899
      %v947 = vadd.f32 %v388, %v901
      %v948 = vadd.f32 %v439, %v940
      %v949 = vadd.f32 %v441, %v942
      %v950 = vxor.u32 %v946, 2147483648
      %v951 = vxor.u32 %v947, 2147483648
      %v952 = vxor.u32 %v948, 2147483648
      %v953 = vmul.f32 %v950, 1.442695
      %v954 = vpow.pop %v953
      %v955 = vmul.f32 %v951, 1.442695
      %v956 = vpow.pop %v955
      %v957 = vmul.f32 %v952, 1.442695
      %v958 = vpow.pop %v957
      %v959 = vadd.f32 %v954, 1.0
      %v960 = vadd.f32 %v956, 1.0
      %v961 = vadd.f32 %v958, 1.0
      %v962 = vrcp.pop %v959
      %v963 = vmul.f32 1.0, %v962
      %v964 = vrcp.pop %v960
      %v965 = vmul.f32 1.0, %v964
      %v966 = vrcp.pop %v961
      %v967 = vmul.f32 1.0, %v966
      %v968 = vtanh.pop %v949
      %v969 = vmul.f32 %v963, %v860
      %v970 = vmul.f32 %v965, %v968
      %v971 = vadd.f32 %v969, %v970
      %v972 = vtanh.pop %v971
      %v973 = vmul.f32 %v967, %v972
      %v974 = vpack.c.bf16 %v973, %v973
      %975 = vmatprep.subr.bf16.mxu0 %v579
      %976 = vmatpush1.bf16.msra.mxu0 %v578
      %977 = vmatprep.subr.bf16.mxu0 %v583
      %978 = vmatpush1.bf16.msra.mxu0 %v582
      %979 = vmatprep.subr.bf16.mxu0 %v587
      %980 = vmatpush1.bf16.msra.mxu0 %v586
      %981 = vmatprep.subr.bf16.mxu0 %v591
      %982 = vmatpush1.bf16.msra.mxu0 %v590
      %983 = vmatprep.subr.bf16.mxu0 %v595
      %984 = vmatpush1.bf16.msra.mxu0 %v594
      %985 = vmatprep.subr.bf16.mxu0 %v599
      %986 = vmatpush1.bf16.msra.mxu0 %v598
      %987 = vmatprep.subr.bf16.mxu0 %v603
      %988 = vmatpush1.bf16.msra.mxu0 %v602
      %989 = vmatprep.subr.bf16.mxu0 %v607
      %990 = vmatpush1.bf16.msra.mxu0 %v606
      %991 = vmatprep.subr.bf16.mxu0 0
      %992 = vmatpush1.bf16.msra.mxu0 0
      %993 = vmatprep.subr.bf16.mxu0 0
      %994 = vmatpush1.bf16.msra.mxu0 0
      %995 = vmatprep.subr.bf16.mxu0 0
      %996 = vmatpush1.bf16.msra.mxu0 0
      %997 = vmatprep.subr.bf16.mxu0 0
      %998 = vmatpush1.bf16.msra.mxu0 0
      %999 = vmatprep.subr.bf16.mxu0 0
      %1000 = vmatpush1.bf16.msra.mxu0 0
      %1001 = vmatprep.subr.bf16.mxu0 0
      %1002 = vmatpush1.bf16.msra.mxu0 0
      %1003 = vmatprep.subr.bf16.mxu0 0
      %1004 = vmatpush1.bf16.msra.mxu0 0
      %1005 = vmatprep.subr.bf16.mxu0 0
      %1006 = vmatpush1.bf16.msra.mxu0 0
      %1007 = vmatprep.mubr.bf16.mxu0 0
      %1008 = vmatmul.mubr.bf16.gmra.mrb[0].mxu0 %v974
      %v1009 = vpop.f32.mrb[0].mxu0
      %v1010 = vadd.f32 0.0, %v1009
      %v1011 = vpop.f32.mrb[0].mxu0
      %v1012 = vadd.f32 0.0, %v1011
      %v1013 = vpop.f32.mrb[0].mxu0
      %v1014 = vpop.f32.mrb[0].mxu0
      %1015 = vdwg.mxu0
      %1016 = vmatprep.subr.bf16.mxu0 %v581
      %1017 = vmatpush1.bf16.msra.mxu0 %v580
      %1018 = vmatprep.subr.bf16.mxu0 %v585
      %1019 = vmatpush1.bf16.msra.mxu0 %v584
      %1020 = vmatprep.subr.bf16.mxu0 %v589
      %1021 = vmatpush1.bf16.msra.mxu0 %v588
      %1022 = vmatprep.subr.bf16.mxu0 %v593
      %1023 = vmatpush1.bf16.msra.mxu0 %v592
      %1024 = vmatprep.subr.bf16.mxu0 %v597
      %1025 = vmatpush1.bf16.msra.mxu0 %v596
      %1026 = vmatprep.subr.bf16.mxu0 %v601
      %1027 = vmatpush1.bf16.msra.mxu0 %v600
      %1028 = vmatprep.subr.bf16.mxu0 %v605
      %1029 = vmatpush1.bf16.msra.mxu0 %v604
      %1030 = vmatprep.subr.bf16.mxu0 %v609
      %1031 = vmatpush1.bf16.msra.mxu0 %v608
      %1032 = vmatprep.subr.bf16.mxu0 0
      %1033 = vmatpush1.bf16.msra.mxu0 0
      %1034 = vmatprep.subr.bf16.mxu0 0
      %1035 = vmatpush1.bf16.msra.mxu0 0
      %1036 = vmatprep.subr.bf16.mxu0 0
      %1037 = vmatpush1.bf16.msra.mxu0 0
      %1038 = vmatprep.subr.bf16.mxu0 0
      %1039 = vmatpush1.bf16.msra.mxu0 0
      %1040 = vmatprep.subr.bf16.mxu0 0
      %1041 = vmatpush1.bf16.msra.mxu0 0
      %1042 = vmatprep.subr.bf16.mxu0 0
      %1043 = vmatpush1.bf16.msra.mxu0 0
      %1044 = vmatprep.subr.bf16.mxu0 0
      %1045 = vmatpush1.bf16.msra.mxu0 0
      %1046 = vmatprep.subr.bf16.mxu0 0
      %1047 = vmatpush1.bf16.msra.mxu0 0
      %1048 = vmatprep.mubr.bf16.mxu0 0
      %1049 = vmatmul.mubr.bf16.gmra.mrb[0].mxu0 %v974
      %v1050 = vpop.f32.mrb[0].mxu0
      %v1051 = vadd.f32 0.0, %v1050
      %v1052 = vpop.f32.mrb[0].mxu0
      %v1053 = vadd.f32 0.0, %v1052
      %v1054 = vpop.f32.mrb[0].mxu0
      %v1055 = vpop.f32.mrb[0].mxu0
      %1056 = vdwg.mxu0
      %v1057 = vadd.f32 %v390, %v1010
      %v1058 = vadd.f32 %v392, %v1012
      %v1059 = vadd.f32 %v443, %v1051
      %v1060 = vadd.f32 %v445, %v1053
      %v1061 = vxor.u32 %v1057, 2147483648
      %v1062 = vxor.u32 %v1058, 2147483648
      %v1063 = vxor.u32 %v1059, 2147483648
      %v1064 = vmul.f32 %v1061, 1.442695
      %v1065 = vpow.pop %v1064
      %v1066 = vmul.f32 %v1062, 1.442695
      %v1067 = vpow.pop %v1066
      %v1068 = vmul.f32 %v1063, 1.442695
      %v1069 = vpow.pop %v1068
      %v1070 = vadd.f32 %v1065, 1.0
      %v1071 = vadd.f32 %v1067, 1.0
      %v1072 = vadd.f32 %v1069, 1.0
      %v1073 = vrcp.pop %v1070
      %v1074 = vmul.f32 1.0, %v1073
      %v1075 = vrcp.pop %v1071
      %v1076 = vmul.f32 1.0, %v1075
      %v1077 = vrcp.pop %v1072
      %v1078 = vmul.f32 1.0, %v1077
      %v1079 = vtanh.pop %v1060
      %v1080 = vmul.f32 %v1074, %v971
      %v1081 = vmul.f32 %v1076, %v1079
      %v1082 = vadd.f32 %v1080, %v1081
      %v1083 = vtanh.pop %v1082
      %v1084 = vmul.f32 %v1078, %v1083
      %1085 = vst [vmem:[#allocation2] sm:$0xff] %v1084
      %1086 = vst [vmem:[#allocation3] sm:$0xff] %v1082
      %p1087 = scmp.eq.s32.totalorder %s22, 1
      // Predicated region
      $region49: #{custom_lstm_classifier_forward.1} parent=43 // pred_check
        %p1088 = pneg %p1087
      $region50: #{custom_lstm_classifier_forward.1} parent=43 // pred_check_branch
        %1090 = sbr.rel (%p1088) target = $region52
      $region51: #{custom_lstm_classifier_forward.1} parent=43 // pred_region
        %v1091 = vpack.c.bf16 %v1084, %v1084
        %v1092 = vld [vmem:[%s4] sm:$0xf]
        %v1093 = vld [vmem:[%s4 + $0x4] sm:$0xf]
        %v1094 = vld [vmem:[%s4 + $0x8] sm:$0xf]
        %v1095 = vld [vmem:[%s4 + $0xc] sm:$0xf]
        %v1096 = vld [vmem:[%s4 + $0x10] sm:$0xf]
        %v1097 = vld [vmem:[%s4 + $0x14] sm:$0xf]
        %v1098 = vld [vmem:[%s4 + $0x18] sm:$0xf]
        %v1099 = vld [vmem:[%s4 + $0x1c] sm:$0xf]
        %v1100 = vld [vmem:[%s4 + $0x20] sm:$0xf]
        %v1101 = vld [vmem:[%s4 + $0x24] sm:$0xf]
        %v1102 = vld [vmem:[%s4 + $0x28] sm:$0xf]
        %v1103 = vld [vmem:[%s4 + $0x2c] sm:$0xf]
        %v1104 = vld [vmem:[%s4 + $0x30] sm:$0xf]
        %v1105 = vld [vmem:[%s4 + $0x34] sm:$0xf]
        %v1106 = vld [vmem:[%s4 + $0x38] sm:$0xf]
        %v1107 = vld [vmem:[%s4 + $0x3c] sm:$0xf]
        %v1108 = vld [vmem:[%s5] sm:$0x1]
        %v1110 = vlaneseq
        %v1111 = vshrl.u32 %v1110, 7
        %v1112 = vsub.s32 0, %v1111
        %v1113 = vrot.slane %v1108, %v1112
        %v1131 = vunpack.c.l.b16 %v1092
        %v1132 = vunpack.c.l.b16 %v1093
        %v1133 = vunpack.c.l.b16 %v1094
        %v1134 = vunpack.c.l.b16 %v1095
        %v1135 = vunpack.c.l.b16 %v1096
        %v1136 = vunpack.c.l.b16 %v1097
        %v1137 = vunpack.c.l.b16 %v1098
        %v1138 = vunpack.c.l.b16 %v1099
        %v1139 = vunpack.c.l.b16 %v1100
        %v1140 = vunpack.c.l.b16 %v1101
        %v1141 = vunpack.c.l.b16 %v1102
        %v1142 = vunpack.c.l.b16 %v1103
        %v1143 = vunpack.c.l.b16 %v1104
        %v1144 = vunpack.c.l.b16 %v1105
        %v1145 = vunpack.c.l.b16 %v1106
        %v1146 = vunpack.c.l.b16 %v1107
        %v1147 = vpack.c.b16 %v1132, %v1131
        %v1148 = vpack.c.b16 %v1134, %v1133
        %v1149 = vpack.c.b16 %v1136, %v1135
        %v1150 = vpack.c.b16 %v1138, %v1137
        %v1151 = vpack.c.b16 %v1140, %v1139
        %v1152 = vpack.c.b16 %v1142, %v1141
        %v1153 = vpack.c.b16 %v1144, %v1143
        %v1154 = vpack.c.b16 %v1146, %v1145
        %1163 = vmatprep.subr.bf16.mxu0 0
        %1164 = vmatpush1.bf16.msra.mxu0 %v1147
        %1165 = vmatprep.subr.bf16.mxu0 0
        %1166 = vmatpush1.bf16.msra.mxu0 %v1148
        %1167 = vmatprep.subr.bf16.mxu0 0
        %1168 = vmatpush1.bf16.msra.mxu0 %v1149
        %1169 = vmatprep.subr.bf16.mxu0 0
        %1170 = vmatpush1.bf16.msra.mxu0 %v1150
        %1171 = vmatprep.subr.bf16.mxu0 0
        %1172 = vmatpush1.bf16.msra.mxu0 %v1151
        %1173 = vmatprep.subr.bf16.mxu0 0
        %1174 = vmatpush1.bf16.msra.mxu0 %v1152
        %1175 = vmatprep.subr.bf16.mxu0 0
        %1176 = vmatpush1.bf16.msra.mxu0 %v1153
        %1177 = vmatprep.subr.bf16.mxu0 0
        %1178 = vmatpush1.bf16.msra.mxu0 %v1154
        %1179 = vmatprep.subr.bf16.mxu0 0
        %1180 = vmatpush1.bf16.msra.mxu0 0
        %1181 = vmatprep.subr.bf16.mxu0 0
        %1182 = vmatpush1.bf16.msra.mxu0 0
        %1183 = vmatprep.subr.bf16.mxu0 0
        %1184 = vmatpush1.bf16.msra.mxu0 0
        %1185 = vmatprep.subr.bf16.mxu0 0
        %1186 = vmatpush1.bf16.msra.mxu0 0
        %1187 = vmatprep.subr.bf16.mxu0 0
        %1188 = vmatpush1.bf16.msra.mxu0 0
        %1189 = vmatprep.subr.bf16.mxu0 0
        %1190 = vmatpush1.bf16.msra.mxu0 0
        %1191 = vmatprep.subr.bf16.mxu0 0
        %1192 = vmatpush1.bf16.msra.mxu0 0
        %1193 = vmatprep.subr.bf16.mxu0 0
        %1194 = vmatpush1.bf16.msra.mxu0 0
        %1195 = vmatprep.mubr.bf16.mxu0 0
        %1196 = vmatmul.mubr.bf16.gmra.mrb[0].mxu0 %v1091
        %v1197 = vpop.f32.mrb[0].mxu0
        %v1198 = vadd.f32 %v1113, %v1197
        %v1199 = vpop.f32.mrb[0].mxu0
        %v1200 = vpop.f32.mrb[0].mxu0
        %v1201 = vpop.f32.mrb[0].mxu0
        %1202 = vdwg.mxu0
        %1203 = vst [vmem:[%s274] sm:$0xff] %v1198
      $region52: #{custom_lstm_classifier_forward.1} parent=43 // pred_fallthru
        _
      %p1204 = scmp.lt.s32.totalorder %s21, 0
      %s1205 = scalar_select %p1204, %s21, 0
      %s1206 = smul.addr %s1205, 8
      %s1207 = scalar_lea.vmem %s6, %s1206
      // Predicated region
      $region53: #{custom_lstm_classifier_forward.1} parent=43 // pred_check
        %p1208 = pneg %p180
      $region54: #{custom_lstm_classifier_forward.1} parent=43 // pred_check_branch
        %1210 = sbr.rel (%p1208) target = $region56
      $region55: #{custom_lstm_classifier_forward.1} parent=43 // pred_region
        _
      $region56: #{custom_lstm_classifier_forward.1} parent=43 // pred_fallthru
        _
      // Predicated region
      $region57: #{custom_lstm_classifier_forward.1} parent=43 // pred_check
        %p1211 = pneg %p180
      $region58: #{custom_lstm_classifier_forward.1} parent=43 // pred_check_branch
        %1213 = sbr.rel (%p1211) target = $region60
      $region59: #{custom_lstm_classifier_forward.1} parent=43 // pred_region
        %p1214 = scmp.lt.s32.totalorder %s21, 0
        %s1215 = scalar_select %p1214, %s21, 0
        %s1216 = smul.addr %s1215, 8
        %s1217 = scalar_lea.vmem %s6, %s1216
      $region60: #{custom_lstm_classifier_forward.1} parent=43 // pred_fallthru
        _
    $region44: #{custom_lstm_classifier_forward.1} parent=5 // pred_fallthru
      _
    %p1218 = scmp.le.s32.totalorder 2, %s12
    // Predicated region
    $region61: #{custom_lstm_classifier_forward.1} parent=5 // pred_check
      %p1219 = pneg %p1218
    $region62: #{custom_lstm_classifier_forward.1} parent=5 // pred_check_branch
      %1221 = sbr.rel (%p1219) target = $region64
    $region63: #{custom_lstm_classifier_forward.1} parent=5 // pred_region
      %s1222 = ssub.s32 %s12, 2
    $region64: #{custom_lstm_classifier_forward.1} parent=5 // pred_fallthru
      _
  $region6: #{custom_lstm_classifier_forward.1} parent=0 // loop_footer
    %s16 = sadd.s32 1, %s12
  $region7: #{custom_lstm_classifier_forward.1} parent=0 // loop_footer_branch
    %11 = sbr.rel target = $region3
  $region8: #{custom_lstm_classifier_forward.1} parent=0 // loop_exit
    _

</llo_original>
